<compile_context>
chip_gen: v7x
topology: tpu7x:2x2x1
jax: 0.10.0
libtpu: 0.0.40
codegen_flags: <defaults>
</compile_context>

<pallas_src>
import functools

import jax
import jax.numpy as jnp
from jax import lax
from jax.experimental import pallas as pl
from jax.experimental.pallas import tpu as pltpu

EPS = 1e-5


def _round_up(n, m):
    return ((n + m - 1) // m) * m


def _bn_relu(h, gamma, beta, inv_n):
    # Training-mode BatchNorm1d (biased batch variance) + ReLU, stats in f32.
    # One-pass sum / sum-of-squares (padded batch rows are exact zeros, so they
    # vanish from both sums), then normalize+affine folded to a single
    # per-feature scale/shift: (h-mu)*rsqrt(var+eps)*g + b == h*scale + shift.
    s = jnp.sum(h, axis=0, keepdims=True)
    ss = jnp.sum(h * h, axis=0, keepdims=True)
    mu = s * inv_n
    var = jnp.maximum(ss * inv_n - mu * mu, 0.0)
    # TODO(synk): one-pass E[h^2]-E[h]^2 can under-estimate var when |mean| >> std
    # (trained nets / very large batches); switch to the two-pass form if needed.
    scale = gamma * lax.rsqrt(var + EPS)
    shift = beta - mu * scale
    return jnp.maximum(h * scale + shift, 0.0)


def plain_mlp_kernel(n_valid, x_ref, w1_ref, gb1_ref, w2_hbm, gb2_ref, w3_ref,
                     b3_ref, feat_ref, y_ref, w2_buf, w2_sem):
    bp = x_ref.shape[0]
    inv_n = 1.0 / n_valid

    # Kick off the largest weight transfer (w2, 640 KiB bf16) so it overlaps with
    # the layer-1 matmul + BN below.
    w2_cp = pltpu.make_async_copy(w2_hbm, w2_buf, w2_sem)
    w2_cp.start()

    xb = x_ref[...].astype(jnp.bfloat16)

    # Layer 1: Linear(dim -> 1280 padded) [bias cancelled by BN] + BN1d + ReLU.
    h1 = jnp.dot(xb, w1_ref[...], preferred_element_type=jnp.float32)
    h1 = _bn_relu(h1, gb1_ref[0:1, :], gb1_ref[1:2, :], inv_n)

    if bp > n_valid:
        # BN's shift made the padded rows nonzero; zero them so they don't
        # contaminate layer-2 batch statistics.
        rowmask = lax.broadcasted_iota(jnp.int32, (bp, 1), 0) < n_valid
        h1 = jnp.where(rowmask, h1, 0.0)

    # Layer 2: Linear(1280 -> 256) [bias cancelled by BN] + BN1d + ReLU (returned feature).
    w2_cp.wait()
    h2 = jnp.dot(h1.astype(jnp.bfloat16), w2_buf[...],
                 preferred_element_type=jnp.float32)
    h2 = _bn_relu(h2, gb2_ref[0:1, :], gb2_ref[1:2, :], inv_n)
    feat_ref[...] = h2.astype(feat_ref.dtype)

    # Head: Linear(256 -> 128 padded); padded logit columns are exact zeros.
    y = jnp.dot(h2.astype(jnp.bfloat16), w3_ref[...],
                preferred_element_type=jnp.float32) + b3_ref[...]
    y_ref[...] = y.astype(y_ref.dtype)


@functools.partial(jax.jit, static_argnames=("C",))
def plain_mlp_forward(x, kp, C):
    B, dim = x.shape
    H1P = kp["w1p"].shape[1]     # 1280
    F2 = kp["w2p"].shape[1]      # 256
    CP = kp["w3p"].shape[1]      # 128

    # Pad batch to a multiple of 16 rows (full packed bf16 sublane tile) with zero rows.
    BP = _round_up(max(B, 1), 16)
    xp = x if BP == B else jnp.pad(x, ((0, BP - B), (0, 0)))

    vmem = pl.BlockSpec(memory_space=pltpu.MemorySpace.VMEM)
    hbm = pl.BlockSpec(memory_space=pl.ANY)     # w2 stays in HBM; DMA'd inside kernel

    in_args = (xp, kp["w1p"], kp["gb1"], kp["w2p"], kp["gb2"], kp["w3p"], kp["b3p"])
    in_specs = [vmem, vmem, vmem, hbm, vmem, vmem, vmem]

    in_bytes = sum(int(a.size) * a.dtype.itemsize for a in in_args)
    out_bytes = BP * (F2 + CP) * 4
    act_bytes = BP * (H1P * 6 + F2 * 6 + CP * 4)      # f32 + bf16 copies of h1/h2/y
    # Sized from actual footprint (no 16 MiB floor); clamped well below v7x's 64 MiB.
    vmem_limit = int(min(4 * (in_bytes + out_bytes + act_bytes) + (4 << 20), 48 << 20))

    cost = pl.CostEstimate(
        flops=2 * BP * (dim * H1P + H1P * F2 + F2 * CP) + 8 * BP * (H1P + F2),
        transcendentals=H1P + F2,            # one rsqrt per BN feature
        bytes_accessed=in_bytes + out_bytes,
    )

    feat, y_pad = pl.pallas_call(
        functools.partial(plain_mlp_kernel, B),
        out_shape=(
            jax.ShapeDtypeStruct((BP, F2), jnp.float32),
            jax.ShapeDtypeStruct((BP, CP), jnp.float32),
        ),
        in_specs=in_specs,
        out_specs=(vmem, vmem),
        scratch_shapes=[
            pltpu.VMEM((H1P, F2), jnp.bfloat16),   # landing buffer for the async w2 copy
            pltpu.SemaphoreType.DMA,
        ],
        compiler_params=pltpu.CompilerParams(vmem_limit_bytes=vmem_limit),
        cost_estimate=cost,
    )(*in_args)
    return feat[:B], y_pad[:B, :C]


def init_params(key, dim, C):
    """PyTorch-like init. Linear weights stored pre-transposed [in, out], in bf16."""
    H1, F2 = 1200, 256
    ks = jax.random.split(key, 10)

    def lin(kw, kb, fan_in, fan_out):
        bound = 1.0 / (fan_in ** 0.5)
        w = jax.random.uniform(kw, (fan_in, fan_out), jnp.float32, -bound, bound)
        b = jax.random.uniform(kb, (1, fan_out), jnp.float32, -bound, bound)
        return w.astype(jnp.bfloat16), b

    w1, b1 = lin(ks[0], ks[1], dim, H1)
    w2, b2 = lin(ks[2], ks[3], H1, F2)
    w3, b3 = lin(ks[4], ks[5], F2, C)

    # BN affine params: nontrivial but deterministic (PyTorch default is ones/zeros).
    g1 = 1.0 + 0.1 * jax.random.normal(ks[6], (1, H1), jnp.float32)
    be1 = 0.1 * jax.random.normal(ks[7], (1, H1), jnp.float32)
    g2 = 1.0 + 0.1 * jax.random.normal(ks[8], (1, F2), jnp.float32)
    be2 = 0.1 * jax.random.normal(ks[9], (1, F2), jnp.float32)

    return dict(w1=w1, b1=b1, g1=g1, be1=be1,
                w2=w2, b2=b2, g2=g2, be2=be2,
                w3=w3, b3=b3)


def pack_params(raw):
    """Pad widths to lane multiples (zeros) and pack the 1-row vectors per layer."""
    dim, H1 = raw["w1"].shape
    F2 = raw["w2"].shape[1]
    C = raw["w3"].shape[1]
    H1P = _round_up(H1, 128)     # 1200 -> 1280
    CP = _round_up(C, 128)       # C    -> 128

    w1p = jnp.zeros((dim, H1P), jnp.bfloat16).at[:, :H1].set(raw["w1"])
    gb1 = (jnp.zeros((2, H1P), jnp.float32)
           .at[0, :H1].set(raw["g1"][0])
           .at[1, :H1].set(raw["be1"][0]))
    w2p = jnp.zeros((H1P, F2), jnp.bfloat16).at[:H1, :].set(raw["w2"])
    gb2 = jnp.concatenate([raw["g2"], raw["be2"]], axis=0)        # [2, F2]
    w3p = jnp.zeros((F2, CP), jnp.bfloat16).at[:, :C].set(raw["w3"])
    b3p = jnp.zeros((1, CP), jnp.float32).at[:, :C].set(raw["b3"])

    # Padding invariants the kernel's BN trick depends on: padded h1 columns only
    # stay harmless because padded gamma/beta AND padded w2 rows are exact zeros,
    # and padded logits are only exact zeros because padded w3 cols / b3 are zero.
    assert bool(jnp.all(gb1[:, H1:] == 0.0)), "padded BN1 gamma/beta must be zero"
    assert bool(jnp.all(w2p[H1:, :] == 0)), "padded w2 rows must be zero"
    assert bool(jnp.all(w3p[:, C:] == 0)) and bool(jnp.all(b3p[:, C:] == 0.0)), \
        "padded head columns must be zero"

    return dict(w1p=w1p, gb1=gb1, w2p=w2p, gb2=gb2, w3p=w3p, b3p=b3p)


def reference_forward(x, p):
    """Pure-JAX mirror of the PyTorch forward (training-mode BN, biases included)."""
    bf = jnp.bfloat16

    def bn_relu(h, g, b):
        mu = jnp.mean(h, axis=0, keepdims=True)
        var = jnp.mean((h - mu) ** 2, axis=0, keepdims=True)
        return jnp.maximum((h - mu) / jnp.sqrt(var + EPS) * g + b, 0.0)

    h1 = bn_relu(jnp.dot(x.astype(bf), p["w1"], preferred_element_type=jnp.float32)
                 + p["b1"], p["g1"], p["be1"])
    h2 = bn_relu(jnp.dot(h1.astype(bf), p["w2"], preferred_element_type=jnp.float32)
                 + p["b2"], p["g2"], p["be2"])
    y = jnp.dot(h2.astype(bf), p["w3"], preferred_element_type=jnp.float32) + p["b3"]
    return h2, y


if __name__ == "__main__":
    key = jax.random.PRNGKey(0)
    k_x, k_p = jax.random.split(key)

    B, dim, C = 8, 32, 10
    x = jax.random.normal(k_x, (B, dim), jnp.float32)
    raw = init_params(k_p, dim, C)
    kparams = pack_params(raw)

    feat, y = plain_mlp_forward(x, kparams, C)
    jax.block_until_ready((feat, y))

    feat_ref, y_ref = reference_forward(x, raw)
    assert feat.shape == (B, 256) and y.shape == (B, C)
    assert jnp.allclose(feat, feat_ref, atol=2e-3, rtol=2e-3)
    assert jnp.allclose(y, y_ref, atol=2e-3, rtol=2e-3)

    print("KERNEL_OK")
</pallas_src>

<mosaic_0001>
module attributes {stable_mosaic.version = 11 : i64} {
  func.func @plain_mlp_kernel(%arg0: memref<16x32xf32, #tpu.memory_space<vmem>>, %arg1: memref<32x1280xbf16, #tpu.memory_space<vmem>>, %arg2: memref<2x1280xf32, #tpu.memory_space<vmem>>, %arg3: memref<1280x256xbf16, #tpu.memory_space<any>>, %arg4: memref<2x256xf32, #tpu.memory_space<vmem>>, %arg5: memref<256x128xbf16, #tpu.memory_space<vmem>>, %arg6: memref<1x128xf32, #tpu.memory_space<vmem>>, %arg7: memref<16x256xf32, #tpu.memory_space<vmem>>, %arg8: memref<16x128xf32, #tpu.memory_space<vmem>>, %arg9: memref<1280x256xbf16, #tpu.memory_space<vmem>>, %arg10: memref<!tpu.dma_semaphore, #tpu.memory_space<semaphore_mem>>) attributes {dimension_semantics = [], scalar_prefetch = 0 : i64, scratch_operands = 2 : i64, tpu.core_type = #tpu.core_type<tc>} {
    tpu.enqueue_dma source(%arg3 : memref<1280x256xbf16, #tpu.memory_space<any>>) target(%arg9 : memref<1280x256xbf16, #tpu.memory_space<vmem>>) target_semaphore(%arg10 : memref<!tpu.dma_semaphore, #tpu.memory_space<semaphore_mem>>)
    %c0 = arith.constant 0 : index
    %c0_0 = arith.constant 0 : index
    %0 = vector.load %arg0[%c0, %c0_0] : memref<16x32xf32, #tpu.memory_space<vmem>>, vector<16x32xf32>
    %1 = arith.truncf %0 : vector<16x32xf32> to vector<16x32xbf16>
    %c0_1 = arith.constant 0 : index
    %c0_2 = arith.constant 0 : index
    %2 = vector.load %arg1[%c0_1, %c0_2] : memref<32x1280xbf16, #tpu.memory_space<vmem>>, vector<32x1280xbf16>
    %cst = arith.constant dense<0.000000e+00> : vector<16x1280xf32>
    %3 = tpu.matmul %1, %2, %cst {dimension_numbers = #tpu.dot_dimension_numbers<[1], [0], [0], [1], [0, 0, 1, 1], [], []>} : vector<16x32xbf16>, vector<32x1280xbf16>, vector<16x1280xf32> -> vector<16x1280xf32>
    %c0_3 = arith.constant 0 : index
    %c0_4 = arith.constant 0 : index
    %4 = vector.load %arg2[%c0_3, %c0_4] : memref<2x1280xf32, #tpu.memory_space<vmem>>, vector<1x1280xf32>
    %c1 = arith.constant 1 : index
    %c0_5 = arith.constant 0 : index
    %5 = vector.load %arg2[%c1, %c0_5] : memref<2x1280xf32, #tpu.memory_space<vmem>>, vector<1x1280xf32>
    %cst_6 = arith.constant dense<0.000000e+00> : vector<1280xf32>
    %6 = vector.multi_reduction <add>, %3, %cst_6 [0] : vector<16x1280xf32> to vector<1280xf32>
    %7 = vector.shape_cast %6 : vector<1280xf32> to vector<1x1280xf32>
    %8 = arith.mulf %3, %3 : vector<16x1280xf32>
    %cst_7 = arith.constant dense<0.000000e+00> : vector<1280xf32>
    %9 = vector.multi_reduction <add>, %8, %cst_7 [0] : vector<16x1280xf32> to vector<1280xf32>
    %10 = vector.shape_cast %9 : vector<1280xf32> to vector<1x1280xf32>
    %cst_8 = arith.constant 1.250000e-01 : f32
    %11 = vector.broadcast %cst_8 : f32 to vector<1x1280xf32>
    %12 = arith.mulf %7, %11 : vector<1x1280xf32>
    %cst_9 = arith.constant 1.250000e-01 : f32
    %13 = vector.broadcast %cst_9 : f32 to vector<1x1280xf32>
    %14 = arith.mulf %10, %13 : vector<1x1280xf32>
    %15 = arith.mulf %12, %12 : vector<1x1280xf32>
    %16 = arith.subf %14, %15 : vector<1x1280xf32>
    %cst_10 = arith.constant 0.000000e+00 : f32
    %17 = vector.broadcast %cst_10 : f32 to vector<1x1280xf32>
    %18 = arith.maximumf %16, %17 : vector<1x1280xf32>
    %cst_11 = arith.constant 9.99999974E-6 : f32
    %19 = vector.broadcast %cst_11 : f32 to vector<1x1280xf32>
    %20 = arith.addf %18, %19 : vector<1x1280xf32>
    %21 = math.rsqrt %20 : vector<1x1280xf32>
    %22 = arith.mulf %4, %21 : vector<1x1280xf32>
    %23 = arith.mulf %12, %22 : vector<1x1280xf32>
    %24 = arith.subf %5, %23 : vector<1x1280xf32>
    %25 = vector.broadcast %22 : vector<1x1280xf32> to vector<16x1280xf32>
    %26 = arith.mulf %3, %25 : vector<16x1280xf32>
    %27 = vector.broadcast %24 : vector<1x1280xf32> to vector<16x1280xf32>
    %28 = arith.addf %26, %27 : vector<16x1280xf32>
    %cst_12 = arith.constant 0.000000e+00 : f32
    %29 = vector.broadcast %cst_12 : f32 to vector<16x1280xf32>
    %30 = arith.maximumf %28, %29 : vector<16x1280xf32>
    %31 = tpu.iota {dimensions = array<i32: 0>} : vector<16x1xi32>
    %c8_i32 = arith.constant 8 : i32
    %32 = vector.broadcast %c8_i32 : i32 to vector<16x1xi32>
    %33 = arith.cmpi slt, %31, %32 : vector<16x1xi32>
    %cst_13 = arith.constant 0.000000e+00 : f32
    %34 = vector.shape_cast %33 : vector<16x1xi1> to vector<16x1xi1>
    %35 = vector.broadcast %34 : vector<16x1xi1> to vector<16x1280xi1>
    %36 = vector.broadcast %cst_13 : f32 to vector<16x1280xf32>
    %37 = arith.select %35, %30, %36 : vector<16x1280xi1>, vector<16x1280xf32>
    tpu.wait_dma2 semaphore(%arg10 : memref<!tpu.dma_semaphore, #tpu.memory_space<semaphore_mem>>) src(%arg3 : memref<1280x256xbf16, #tpu.memory_space<any>>) dst(%arg9 : memref<1280x256xbf16, #tpu.memory_space<vmem>>)
    %38 = arith.truncf %37 : vector<16x1280xf32> to vector<16x1280xbf16>
    %c0_14 = arith.constant 0 : index
    %c0_15 = arith.constant 0 : index
    %39 = vector.load %arg9[%c0_14, %c0_15] : memref<1280x256xbf16, #tpu.memory_space<vmem>>, vector<1280x256xbf16>
    %cst_16 = arith.constant dense<0.000000e+00> : vector<16x256xf32>
    %40 = tpu.matmul %38, %39, %cst_16 {dimension_numbers = #tpu.dot_dimension_numbers<[1], [0], [0], [1], [0, 0, 1, 1], [], []>} : vector<16x1280xbf16>, vector<1280x256xbf16>, vector<16x256xf32> -> vector<16x256xf32>
    %c0_17 = arith.constant 0 : index
    %c0_18 = arith.constant 0 : index
    %41 = vector.load %arg4[%c0_17, %c0_18] : memref<2x256xf32, #tpu.memory_space<vmem>>, vector<1x256xf32>
    %c1_19 = arith.constant 1 : index
    %c0_20 = arith.constant 0 : index
    %42 = vector.load %arg4[%c1_19, %c0_20] : memref<2x256xf32, #tpu.memory_space<vmem>>, vector<1x256xf32>
    %cst_21 = arith.constant dense<0.000000e+00> : vector<256xf32>
    %43 = vector.multi_reduction <add>, %40, %cst_21 [0] : vector<16x256xf32> to vector<256xf32>
    %44 = vector.shape_cast %43 : vector<256xf32> to vector<1x256xf32>
    %45 = arith.mulf %40, %40 : vector<16x256xf32>
    %cst_22 = arith.constant dense<0.000000e+00> : vector<256xf32>
    %46 = vector.multi_reduction <add>, %45, %cst_22 [0] : vector<16x256xf32> to vector<256xf32>
    %47 = vector.shape_cast %46 : vector<256xf32> to vector<1x256xf32>
    %cst_23 = arith.constant 1.250000e-01 : f32
    %48 = vector.broadcast %cst_23 : f32 to vector<1x256xf32>
    %49 = arith.mulf %44, %48 : vector<1x256xf32>
    %cst_24 = arith.constant 1.250000e-01 : f32
    %50 = vector.broadcast %cst_24 : f32 to vector<1x256xf32>
    %51 = arith.mulf %47, %50 : vector<1x256xf32>
    %52 = arith.mulf %49, %49 : vector<1x256xf32>
    %53 = arith.subf %51, %52 : vector<1x256xf32>
    %cst_25 = arith.constant 0.000000e+00 : f32
    %54 = vector.broadcast %cst_25 : f32 to vector<1x256xf32>
    %55 = arith.maximumf %53, %54 : vector<1x256xf32>
    %cst_26 = arith.constant 9.99999974E-6 : f32
    %56 = vector.broadcast %cst_26 : f32 to vector<1x256xf32>
    %57 = arith.addf %55, %56 : vector<1x256xf32>
    %58 = math.rsqrt %57 : vector<1x256xf32>
    %59 = arith.mulf %41, %58 : vector<1x256xf32>
    %60 = arith.mulf %49, %59 : vector<1x256xf32>
    %61 = arith.subf %42, %60 : vector<1x256xf32>
    %62 = vector.broadcast %59 : vector<1x256xf32> to vector<16x256xf32>
    %63 = arith.mulf %40, %62 : vector<16x256xf32>
    %64 = vector.broadcast %61 : vector<1x256xf32> to vector<16x256xf32>
    %65 = arith.addf %63, %64 : vector<16x256xf32>
    %cst_27 = arith.constant 0.000000e+00 : f32
    %66 = vector.broadcast %cst_27 : f32 to vector<16x256xf32>
    %67 = arith.maximumf %65, %66 : vector<16x256xf32>
    %c0_28 = arith.constant 0 : index
    %c0_29 = arith.constant 0 : index
    %68 = vector.load %arg7[%c0_28, %c0_29] : memref<16x256xf32, #tpu.memory_space<vmem>>, vector<16x256xf32>
    tpu.vector_store %arg7[%c0_28, %c0_29], %67 {strides = array<i32>} : memref<16x256xf32, #tpu.memory_space<vmem>>, vector<16x256xf32>,
    %69 = arith.truncf %67 : vector<16x256xf32> to vector<16x256xbf16>
    %c0_30 = arith.constant 0 : index
    %c0_31 = arith.constant 0 : index
    %70 = vector.load %arg5[%c0_30, %c0_31] : memref<256x128xbf16, #tpu.memory_space<vmem>>, vector<256x128xbf16>
    %cst_32 = arith.constant dense<0.000000e+00> : vector<16x128xf32>
    %71 = tpu.matmul %69, %70, %cst_32 {dimension_numbers = #tpu.dot_dimension_numbers<[1], [0], [0], [1], [0, 0, 1, 1], [], []>} : vector<16x256xbf16>, vector<256x128xbf16>, vector<16x128xf32> -> vector<16x128xf32>
    %c0_33 = arith.constant 0 : index
    %c0_34 = arith.constant 0 : index
    %72 = vector.load %arg6[%c0_33, %c0_34] : memref<1x128xf32, #tpu.memory_space<vmem>>, vector<1x128xf32>
    %73 = vector.broadcast %72 : vector<1x128xf32> to vector<16x128xf32>
    %74 = arith.addf %71, %73 : vector<16x128xf32>
    %c0_35 = arith.constant 0 : index
    %c0_36 = arith.constant 0 : index
    %75 = vector.load %arg8[%c0_35, %c0_36] : memref<16x128xf32, #tpu.memory_space<vmem>>, vector<16x128xf32>
    tpu.vector_store %arg8[%c0_35, %c0_36], %74 {strides = array<i32>} : memref<16x128xf32, #tpu.memory_space<vmem>>, vector<16x128xf32>,
    return
  }
}

</mosaic_0001>

<llo_original>
// kernel: plain_mlp_forward.1
$region0: #{plain_mlp_forward.1}
  #allocation0 [shape = 'u32[]', space=smem, size = 0x4, offset = 0x4, fixed_abs, tag = 'smem constant byte address 0x4 - core index']
  #allocation1 [shape = 'u32[144,128]{1,0:T(1,128)}', space=vmem, size = 0x12000, scoped, tag = 'internal scratch']
  #allocation2 [shape = 'bf16[1280,256]{1,0:T(16,128)(2,1)}', space=vmem, size = 0xa0000, scoped, tag = 'scratch operand']
  #allocation3 [shape = 's32[1]{0}', space=sflag, size = 0x4, scoped, tag = 'scratch operand']
  #allocation8 [shape = 's32[]', space=sflag, size = 0x4, offset = 0, fixed_abs, tag = 'sflag constant byte address 0x0 - dummy sync flag']
  %s0 = inlined_call_operand.vmem [shape: f32[16,32], index: 0, kind: input, shape index: {}]
  %s1 = inlined_call_operand.hbm [shape: bf16[32,1280], index: 1, kind: input, shape index: {}]
  %s2 = inlined_call_operand.vmem [shape: f32[2,1280], index: 2, kind: input, shape index: {}]
  %s3 = inlined_call_operand.hbm [shape: bf16[1280,256], index: 3, kind: input, shape index: {}]
  %s4 = inlined_call_operand.vmem [shape: f32[2,256], index: 4, kind: input, shape index: {}]
  %s5 = inlined_call_operand.hbm [shape: bf16[256,128], index: 5, kind: input, shape index: {}]
  %s6 = inlined_call_operand.vmem [shape: f32[1,128], index: 6, kind: input, shape index: {}]
  %s7 = inlined_call_operand.vmem [shape: f32[16,256], index: 7, kind: output, shape index: {0}]
  %s8 = inlined_call_operand.vmem [shape: f32[16,128], index: 8, kind: output, shape index: {1}]
  %9 = xla_tuple %s7, %s8
  %s10 = sld [smem:[#allocation0]]
  $region50: #{plain_mlp_forward.1} parent=0
    _
  %s12 = ssub.s32 1, %s10
  %s13 = scalar_select 0, %s12, %s10
  $region1: #{plain_mlp_forward.1} parent=0
    #allocation4 [shape = 'u8[81920]{0}', space=vmem, size = 0x14000, scoped, tag = 'input window, operand 1, single buffered']
    #allocation5 [shape = 's32[1]{0}', space=sflag, size = 0x4, scoped, tag = 'scoped memory for plain_mlp_forward.1']
    #allocation6 [shape = 'u8[65536]{0}', space=vmem, size = 0x10000, scoped, tag = 'input window, operand 5, single buffered']
    #allocation7 [shape = 's32[1]{0}', space=sflag, size = 0x4, scoped, tag = 'scoped memory for plain_mlp_forward.1']
    #allocation9 [shape = 'u32[9]{0}', space=smem, size = 0x24, scoped, tag = 'DMA stride descriptor']
    %14 = vsyncpa [#allocation5], 0
    %15 = vsyncpa [#allocation7], 0
    // Predicated region
    $region2: #{plain_mlp_forward.1} parent=1 // pred_check
      _
    $region3: #{plain_mlp_forward.1} parent=1 // pred_check_branch
      %17 = sbr.rel (0) target = $region5
    $region4: #{plain_mlp_forward.1} parent=1 // pred_region
      _
    $region5: #{plain_mlp_forward.1} parent=1 // pred_fallthru
      _
    // Predicated region
    $region6: #{plain_mlp_forward.1} parent=1 // pred_check
      _
    $region7: #{plain_mlp_forward.1} parent=1 // pred_check_branch
      %19 = sbr.rel (0) target = $region9
    $region8: #{plain_mlp_forward.1} parent=1 // pred_region
      %s21 = ssub.s32 2560, 2560
      %22 = vsyncadd [#allocation5], %s21
      %s23 = sshll.u32 [#allocation4], 4
      %s24 = int_to_ptr.vmem [resolvable:$true] %s23
      %29 = dma.hbm_to_vmem [thread:$0]  %s1, 2560, %s24, [#allocation5], 640, 640, 40
    $region9: #{plain_mlp_forward.1} parent=1 // pred_fallthru
      _
    // Predicated region
    $region10: #{plain_mlp_forward.1} parent=1 // pred_check
      _
    $region11: #{plain_mlp_forward.1} parent=1 // pred_check_branch
      %31 = sbr.rel (0) target = $region13
    $region12: #{plain_mlp_forward.1} parent=1 // pred_region
      _
    $region13: #{plain_mlp_forward.1} parent=1 // pred_fallthru
      _
    // Predicated region
    $region14: #{plain_mlp_forward.1} parent=1 // pred_check
      _
    $region15: #{plain_mlp_forward.1} parent=1 // pred_check_branch
      %33 = sbr.rel (0) target = $region17
    $region16: #{plain_mlp_forward.1} parent=1 // pred_region
      _
    $region17: #{plain_mlp_forward.1} parent=1 // pred_fallthru
      _
    // Predicated region
    $region18: #{plain_mlp_forward.1} parent=1 // pred_check
      _
    $region19: #{plain_mlp_forward.1} parent=1 // pred_check_branch
      %35 = sbr.rel (0) target = $region21
    $region20: #{plain_mlp_forward.1} parent=1 // pred_region
      %s37 = ssub.s32 2048, 2048
      %38 = vsyncadd [#allocation7], %s37
      %s39 = sshll.u32 [#allocation6], 4
      %s40 = int_to_ptr.vmem [resolvable:$true] %s39
      %45 = dma.hbm_to_vmem [thread:$0]  %s5, 2048, %s40, [#allocation7], 64, 64, 4
    $region21: #{plain_mlp_forward.1} parent=1 // pred_fallthru
      _
    // Predicated region
    $region22: #{plain_mlp_forward.1} parent=1 // pred_check
      _
    $region23: #{plain_mlp_forward.1} parent=1 // pred_check_branch
      %47 = sbr.rel (0) target = $region25
    $region24: #{plain_mlp_forward.1} parent=1 // pred_region
      _
    $region25: #{plain_mlp_forward.1} parent=1 // pred_fallthru
      _
    // Predicated region
    $region26: #{plain_mlp_forward.1} parent=1 // pred_check
      _
    $region27: #{plain_mlp_forward.1} parent=1 // pred_check_branch
      %49 = sbr.rel (0) target = $region29
    $region28: #{plain_mlp_forward.1} parent=1 // pred_region
      %50 = dma.done [#allocation5], 2560
    $region29: #{plain_mlp_forward.1} parent=1 // pred_fallthru
      _
    // Predicated region
    $region30: #{plain_mlp_forward.1} parent=1 // pred_check
      _
    $region31: #{plain_mlp_forward.1} parent=1 // pred_check_branch
      %52 = sbr.rel (0) target = $region33
    $region32: #{plain_mlp_forward.1} parent=1 // pred_region
      %53 = dma.done [#allocation7], 2048
    $region33: #{plain_mlp_forward.1} parent=1 // pred_fallthru
      _
    %s56 = sshll.u32 1, 14
    %s57 = sxor.u32 4294967295, %s56
    %s59 = sld [smem:[#allocation0]]
    %s60 = sadd.s32 2, %s59
    %s62 = sshll.u32 7, 26
    %s63 = sxor.u32 4294967295, %s62
    %s64 = sand.u32 0, %s63
    %s65 = sshll.u32 %s60, 26
    %s66 = sor.u32 %s64, %s65
    %s67 = sshll.u32 [#allocation2], 4
    %s68 = int_to_ptr.vmem [resolvable:$true] %s67
    %71 = sst [smem:[#allocation9]] 256
    %s72 = scalar_lea.smem [#allocation9], 1
    %73 = sst [smem:[%s72]] 256
    %s74 = scalar_lea.smem [#allocation9], 2
    %75 = sst [smem:[%s74]] 2
    %s76 = scalar_lea.smem [#allocation9], 3
    %77 = sst [smem:[%s76]] 64
    %s78 = scalar_lea.smem [#allocation9], 4
    %79 = sst [smem:[%s78]] 128
    %s80 = scalar_lea.smem [#allocation9], 5
    %81 = sst [smem:[%s80]] 2
    %s82 = scalar_lea.smem [#allocation9], 6
    %83 = sst [smem:[%s82]] 128
    %s84 = scalar_lea.smem [#allocation9], 7
    %85 = sst [smem:[%s84]] 64
    %s86 = scalar_lea.smem [#allocation9], 8
    %87 = sst [smem:[%s86]] 4
    %89 = dma.general %s3, 20480, %s68, [#allocation3], [#allocation8], [#allocation9], %s66, 0
    %v90 = vld [vmem:[%s0] sm:$0xff]
    %v91 = vld [vmem:[%s0 + $0x8] sm:$0xff]
    %v92 = vpack.c.bf16 %v91, %v90
    %v93 = vld [vmem:[#allocation4] sm:$0xff]
    %v94 = vld [vmem:[#allocation4 + $0x8] sm:$0xff]
    %v95 = vld [vmem:[#allocation4 + $0x10] sm:$0xff]
    %v96 = vld [vmem:[#allocation4 + $0x18] sm:$0xff]
    %v97 = vld [vmem:[#allocation4 + $0x20] sm:$0xff]
    %v98 = vld [vmem:[#allocation4 + $0x28] sm:$0xff]
    %v99 = vld [vmem:[#allocation4 + $0x30] sm:$0xff]
    %v100 = vld [vmem:[#allocation4 + $0x38] sm:$0xff]
    %v101 = vld [vmem:[#allocation4 + $0x40] sm:$0xff]
    %v102 = vld [vmem:[#allocation4 + $0x48] sm:$0xff]
    %v103 = vld [vmem:[#allocation4 + $0x50] sm:$0xff]
    %v104 = vld [vmem:[#allocation4 + $0x58] sm:$0xff]
    %v105 = vld [vmem:[#allocation4 + $0x60] sm:$0xff]
    %v106 = vld [vmem:[#allocation4 + $0x68] sm:$0xff]
    %v107 = vld [vmem:[#allocation4 + $0x70] sm:$0xff]
    %v108 = vld [vmem:[#allocation4 + $0x78] sm:$0xff]
    %v109 = vld [vmem:[#allocation4 + $0x80] sm:$0xff]
    %v110 = vld [vmem:[#allocation4 + $0x88] sm:$0xff]
    %v111 = vld [vmem:[#allocation4 + $0x90] sm:$0xff]
    %v112 = vld [vmem:[#allocation4 + $0x98] sm:$0xff]
    %v133 = vunpack.c.l.b16 %v93
    %v134 = vunpack.c.h.b16 %v93
    %v135 = vunpack.c.l.b16 %v94
    %v136 = vunpack.c.h.b16 %v94
    %v137 = vunpack.c.l.b16 %v95
    %v138 = vunpack.c.h.b16 %v95
    %v139 = vunpack.c.l.b16 %v96
    %v140 = vunpack.c.h.b16 %v96
    %v141 = vunpack.c.l.b16 %v97
    %v142 = vunpack.c.h.b16 %v97
    %v143 = vunpack.c.l.b16 %v98
    %v144 = vunpack.c.h.b16 %v98
    %v145 = vunpack.c.l.b16 %v99
    %v146 = vunpack.c.h.b16 %v99
    %v147 = vunpack.c.l.b16 %v100
    %v148 = vunpack.c.h.b16 %v100
    %v149 = vunpack.c.l.b16 %v101
    %v150 = vunpack.c.h.b16 %v101
    %v151 = vunpack.c.l.b16 %v102
    %v152 = vunpack.c.h.b16 %v102
    %v153 = vunpack.c.l.b16 %v103
    %v154 = vunpack.c.h.b16 %v103
    %v155 = vunpack.c.l.b16 %v104
    %v156 = vunpack.c.h.b16 %v104
    %v157 = vunpack.c.l.b16 %v105
    %v158 = vunpack.c.h.b16 %v105
    %v159 = vunpack.c.l.b16 %v106
    %v160 = vunpack.c.h.b16 %v106
    %v161 = vunpack.c.l.b16 %v107
    %v162 = vunpack.c.h.b16 %v107
    %v163 = vunpack.c.l.b16 %v108
    %v164 = vunpack.c.h.b16 %v108
    %v165 = vunpack.c.l.b16 %v109
    %v166 = vunpack.c.h.b16 %v109
    %v167 = vunpack.c.l.b16 %v110
    %v168 = vunpack.c.h.b16 %v110
    %v169 = vunpack.c.l.b16 %v111
    %v170 = vunpack.c.h.b16 %v111
    %v171 = vunpack.c.l.b16 %v112
    %v172 = vunpack.c.h.b16 %v112
    %v173 = vpack.c.b16 %v143, %v133
    %v174 = vpack.c.b16 %v144, %v134
    %v175 = vpack.c.b16 %v145, %v135
    %v176 = vpack.c.b16 %v146, %v136
    %v177 = vpack.c.b16 %v147, %v137
    %v178 = vpack.c.b16 %v148, %v138
    %v179 = vpack.c.b16 %v149, %v139
    %v180 = vpack.c.b16 %v150, %v140
    %v181 = vpack.c.b16 %v151, %v141
    %v182 = vpack.c.b16 %v152, %v142
    %v183 = vpack.c.b16 %v163, %v153
    %v184 = vpack.c.b16 %v164, %v154
    %v185 = vpack.c.b16 %v165, %v155
    %v186 = vpack.c.b16 %v166, %v156
    %v187 = vpack.c.b16 %v167, %v157
    %v188 = vpack.c.b16 %v168, %v158
    %v189 = vpack.c.b16 %v169, %v159
    %v190 = vpack.c.b16 %v170, %v160
    %v191 = vpack.c.b16 %v171, %v161
    %v192 = vpack.c.b16 %v172, %v162
    %vm213 = vcmask 261120
    %v215 = vsel %vm213, %v92, 0
    %217 = vmatprep.subr.bf16.mxu0 %v174
    %218 = vmatpush1.bf16.msra.mxu0 %v173
    %219 = vmatprep.subr.bf16.mxu0 %v184
    %220 = vmatpush1.bf16.msra.mxu0 %v183
    %221 = vmatprep.subr.bf16.mxu0 0
    %222 = vmatpush1.bf16.msra.mxu0 0
    %223 = vmatprep.subr.bf16.mxu0 0
    %224 = vmatpush1.bf16.msra.mxu0 0
    %225 = vmatprep.subr.bf16.mxu0 0
    %226 = vmatpush1.bf16.msra.mxu0 0
    %227 = vmatprep.subr.bf16.mxu0 0
    %228 = vmatpush1.bf16.msra.mxu0 0
    %229 = vmatprep.subr.bf16.mxu0 0
    %230 = vmatpush1.bf16.msra.mxu0 0
    %231 = vmatprep.subr.bf16.mxu0 0
    %232 = vmatpush1.bf16.msra.mxu0 0
    %233 = vmatprep.subr.bf16.mxu0 0
    %234 = vmatpush1.bf16.msra.mxu0 0
    %235 = vmatprep.subr.bf16.mxu0 0
    %236 = vmatpush1.bf16.msra.mxu0 0
    %237 = vmatprep.subr.bf16.mxu0 0
    %238 = vmatpush1.bf16.msra.mxu0 0
    %239 = vmatprep.subr.bf16.mxu0 0
    %240 = vmatpush1.bf16.msra.mxu0 0
    %241 = vmatprep.subr.bf16.mxu0 0
    %242 = vmatpush1.bf16.msra.mxu0 0
    %243 = vmatprep.subr.bf16.mxu0 0
    %244 = vmatpush1.bf16.msra.mxu0 0
    %245 = vmatprep.subr.bf16.mxu0 0
    %246 = vmatpush1.bf16.msra.mxu0 0
    %247 = vmatprep.subr.bf16.mxu0 0
    %248 = vmatpush1.bf16.msra.mxu0 0
    %249 = vmatprep.mubr.bf16.mxu0 0
    %250 = vmatmul.mubr.bf16.gmra.mrb[0].mxu0 %v215
    %v251 = vpop.f32.mrb[0].mxu0
    %v252 = vadd.f32 0.0, %v251
    %v253 = vpop.f32.mrb[0].mxu0
    %v254 = vadd.f32 0.0, %v253
    %v255 = vpop.f32.mrb[0].mxu0
    %v256 = vadd.f32 0.0, %v255
    %v257 = vpop.f32.mrb[0].mxu0
    %v258 = vadd.f32 0.0, %v257
    %259 = vdwg.mxu0
    %260 = vmatprep.subr.bf16.mxu0 %v176
    %261 = vmatpush1.bf16.msra.mxu0 %v175
    %262 = vmatprep.subr.bf16.mxu0 %v186
    %263 = vmatpush1.bf16.msra.mxu0 %v185
    %264 = vmatprep.subr.bf16.mxu0 0
    %265 = vmatpush1.bf16.msra.mxu0 0
    %266 = vmatprep.subr.bf16.mxu0 0
    %267 = vmatpush1.bf16.msra.mxu0 0
    %268 = vmatprep.subr.bf16.mxu0 0
    %269 = vmatpush1.bf16.msra.mxu0 0
    %270 = vmatprep.subr.bf16.mxu0 0
    %271 = vmatpush1.bf16.msra.mxu0 0
    %272 = vmatprep.subr.bf16.mxu0 0
    %273 = vmatpush1.bf16.msra.mxu0 0
    %274 = vmatprep.subr.bf16.mxu0 0
    %275 = vmatpush1.bf16.msra.mxu0 0
    %276 = vmatprep.subr.bf16.mxu0 0
    %277 = vmatpush1.bf16.msra.mxu0 0
    %278 = vmatprep.subr.bf16.mxu0 0
    %279 = vmatpush1.bf16.msra.mxu0 0
    %280 = vmatprep.subr.bf16.mxu0 0
    %281 = vmatpush1.bf16.msra.mxu0 0
    %282 = vmatprep.subr.bf16.mxu0 0
    %283 = vmatpush1.bf16.msra.mxu0 0
    %284 = vmatprep.subr.bf16.mxu0 0
    %285 = vmatpush1.bf16.msra.mxu0 0
    %286 = vmatprep.subr.bf16.mxu0 0
    %287 = vmatpush1.bf16.msra.mxu0 0
    %288 = vmatprep.subr.bf16.mxu0 0
    %289 = vmatpush1.bf16.msra.mxu0 0
    %290 = vmatprep.subr.bf16.mxu0 0
    %291 = vmatpush1.bf16.msra.mxu0 0
    %292 = vmatprep.mubr.bf16.mxu0 0
    %293 = vmatmul.mubr.bf16.gmra.mrb[0].mxu0 %v215
    %v294 = vpop.f32.mrb[0].mxu0
    %v295 = vadd.f32 0.0, %v294
    %v296 = vpop.f32.mrb[0].mxu0
    %v297 = vadd.f32 0.0, %v296
    %v298 = vpop.f32.mrb[0].mxu0
    %v299 = vadd.f32 0.0, %v298
    %v300 = vpop.f32.mrb[0].mxu0
    %v301 = vadd.f32 0.0, %v300
    %302 = vdwg.mxu0
    %303 = vmatprep.subr.bf16.mxu0 %v178
    %304 = vmatpush1.bf16.msra.mxu0 %v177
    %305 = vmatprep.subr.bf16.mxu0 %v188
    %306 = vmatpush1.bf16.msra.mxu0 %v187
    %307 = vmatprep.subr.bf16.mxu0 0
    %308 = vmatpush1.bf16.msra.mxu0 0
    %309 = vmatprep.subr.bf16.mxu0 0
    %310 = vmatpush1.bf16.msra.mxu0 0
    %311 = vmatprep.subr.bf16.mxu0 0
    %312 = vmatpush1.bf16.msra.mxu0 0
    %313 = vmatprep.subr.bf16.mxu0 0
    %314 = vmatpush1.bf16.msra.mxu0 0
    %315 = vmatprep.subr.bf16.mxu0 0
    %316 = vmatpush1.bf16.msra.mxu0 0
    %317 = vmatprep.subr.bf16.mxu0 0
    %318 = vmatpush1.bf16.msra.mxu0 0
    %319 = vmatprep.subr.bf16.mxu0 0
    %320 = vmatpush1.bf16.msra.mxu0 0
    %321 = vmatprep.subr.bf16.mxu0 0
    %322 = vmatpush1.bf16.msra.mxu0 0
    %323 = vmatprep.subr.bf16.mxu0 0
    %324 = vmatpush1.bf16.msra.mxu0 0
    %325 = vmatprep.subr.bf16.mxu0 0
    %326 = vmatpush1.bf16.msra.mxu0 0
    %327 = vmatprep.subr.bf16.mxu0 0
    %328 = vmatpush1.bf16.msra.mxu0 0
    %329 = vmatprep.subr.bf16.mxu0 0
    %330 = vmatpush1.bf16.msra.mxu0 0
    %331 = vmatprep.subr.bf16.mxu0 0
    %332 = vmatpush1.bf16.msra.mxu0 0
    %333 = vmatprep.subr.bf16.mxu0 0
    %334 = vmatpush1.bf16.msra.mxu0 0
    %335 = vmatprep.mubr.bf16.mxu0 0
    %336 = vmatmul.mubr.bf16.gmra.mrb[0].mxu0 %v215
    %v337 = vpop.f32.mrb[0].mxu0
    %v338 = vadd.f32 0.0, %v337
    %v339 = vpop.f32.mrb[0].mxu0
    %v340 = vadd.f32 0.0, %v339
    %v341 = vpop.f32.mrb[0].mxu0
    %v342 = vadd.f32 0.0, %v341
    %v343 = vpop.f32.mrb[0].mxu0
    %v344 = vadd.f32 0.0, %v343
    %345 = vdwg.mxu0
    %346 = vmatprep.subr.bf16.mxu0 %v180
    %347 = vmatpush1.bf16.msra.mxu0 %v179
    %348 = vmatprep.subr.bf16.mxu0 %v190
    %349 = vmatpush1.bf16.msra.mxu0 %v189
    %350 = vmatprep.subr.bf16.mxu0 0
    %351 = vmatpush1.bf16.msra.mxu0 0
    %352 = vmatprep.subr.bf16.mxu0 0
    %353 = vmatpush1.bf16.msra.mxu0 0
    %354 = vmatprep.subr.bf16.mxu0 0
    %355 = vmatpush1.bf16.msra.mxu0 0
    %356 = vmatprep.subr.bf16.mxu0 0
    %357 = vmatpush1.bf16.msra.mxu0 0
    %358 = vmatprep.subr.bf16.mxu0 0
    %359 = vmatpush1.bf16.msra.mxu0 0
    %360 = vmatprep.subr.bf16.mxu0 0
    %361 = vmatpush1.bf16.msra.mxu0 0
    %362 = vmatprep.subr.bf16.mxu0 0
    %363 = vmatpush1.bf16.msra.mxu0 0
    %364 = vmatprep.subr.bf16.mxu0 0
    %365 = vmatpush1.bf16.msra.mxu0 0
    %366 = vmatprep.subr.bf16.mxu0 0
    %367 = vmatpush1.bf16.msra.mxu0 0
    %368 = vmatprep.subr.bf16.mxu0 0
    %369 = vmatpush1.bf16.msra.mxu0 0
    %370 = vmatprep.subr.bf16.mxu0 0
    %371 = vmatpush1.bf16.msra.mxu0 0
    %372 = vmatprep.subr.bf16.mxu0 0
    %373 = vmatpush1.bf16.msra.mxu0 0
    %374 = vmatprep.subr.bf16.mxu0 0
    %375 = vmatpush1.bf16.msra.mxu0 0
    %376 = vmatprep.subr.bf16.mxu0 0
    %377 = vmatpush1.bf16.msra.mxu0 0
    %378 = vmatprep.mubr.bf16.mxu0 0
    %379 = vmatmul.mubr.bf16.gmra.mrb[0].mxu0 %v215
    %v380 = vpop.f32.mrb[0].mxu0
    %v381 = vadd.f32 0.0, %v380
    %v382 = vpop.f32.mrb[0].mxu0
    %v383 = vadd.f32 0.0, %v382
    %v384 = vpop.f32.mrb[0].mxu0
    %v385 = vadd.f32 0.0, %v384
    %v386 = vpop.f32.mrb[0].mxu0
    %v387 = vadd.f32 0.0, %v386
    %388 = vdwg.mxu0
    %389 = vmatprep.subr.bf16.mxu0 %v182
    %390 = vmatpush1.bf16.msra.mxu0 %v181
    %391 = vmatprep.subr.bf16.mxu0 %v192
    %392 = vmatpush1.bf16.msra.mxu0 %v191
    %393 = vmatprep.subr.bf16.mxu0 0
    %394 = vmatpush1.bf16.msra.mxu0 0
    %395 = vmatprep.subr.bf16.mxu0 0
    %396 = vmatpush1.bf16.msra.mxu0 0
    %397 = vmatprep.subr.bf16.mxu0 0
    %398 = vmatpush1.bf16.msra.mxu0 0
    %399 = vmatprep.subr.bf16.mxu0 0
    %400 = vmatpush1.bf16.msra.mxu0 0
    %401 = vmatprep.subr.bf16.mxu0 0
    %402 = vmatpush1.bf16.msra.mxu0 0
    %403 = vmatprep.subr.bf16.mxu0 0
    %404 = vmatpush1.bf16.msra.mxu0 0
    %405 = vmatprep.subr.bf16.mxu0 0
    %406 = vmatpush1.bf16.msra.mxu0 0
    %407 = vmatprep.subr.bf16.mxu0 0
    %408 = vmatpush1.bf16.msra.mxu0 0
    %409 = vmatprep.subr.bf16.mxu0 0
    %410 = vmatpush1.bf16.msra.mxu0 0
    %411 = vmatprep.subr.bf16.mxu0 0
    %412 = vmatpush1.bf16.msra.mxu0 0
    %413 = vmatprep.subr.bf16.mxu0 0
    %414 = vmatpush1.bf16.msra.mxu0 0
    %415 = vmatprep.subr.bf16.mxu0 0
    %416 = vmatpush1.bf16.msra.mxu0 0
    %417 = vmatprep.subr.bf16.mxu0 0
    %418 = vmatpush1.bf16.msra.mxu0 0
    %419 = vmatprep.subr.bf16.mxu0 0
    %420 = vmatpush1.bf16.msra.mxu0 0
    %421 = vmatprep.mubr.bf16.mxu0 0
    %422 = vmatmul.mubr.bf16.gmra.mrb[0].mxu0 %v215
    %v423 = vpop.f32.mrb[0].mxu0
    %v424 = vadd.f32 0.0, %v423
    %v425 = vpop.f32.mrb[0].mxu0
    %v426 = vadd.f32 0.0, %v425
    %v427 = vpop.f32.mrb[0].mxu0
    %v428 = vadd.f32 0.0, %v427
    %v429 = vpop.f32.mrb[0].mxu0
    %v430 = vadd.f32 0.0, %v429
    %431 = vdwg.mxu0
    %v432 = vld [vmem:[%s2] ss:$2 sm:$0xff]
    %s433 = scalar_lea.vmem %s2, 16
    %v434 = vld [vmem:[%s433] ss:$2 sm:$0x3]
    %s435 = scalar_lea.vmem %s2, 1
    %v436 = vld [vmem:[%s435] ss:$2 sm:$0xff]
    %s437 = scalar_lea.vmem %s2, 17
    %v438 = vld [vmem:[%s437] ss:$2 sm:$0x3]
    %v439 = vadd.f32 %v252, %v256
    %v440 = vrot.slane %v439, 4
    %v441 = vadd.f32 %v439, %v440
    %v442 = vrot.slane %v441, 2
    %v443 = vadd.f32 %v441, %v442
    %v444 = vrot.slane %v443, 1
    %v445 = vadd.f32 %v443, %v444
    %v446 = vadd.f32 %v254, %v258
    %v447 = vrot.slane %v446, 4
    %v448 = vadd.f32 %v446, %v447
    %v449 = vrot.slane %v448, 2
    %v450 = vadd.f32 %v448, %v449
    %v451 = vrot.slane %v450, 1
    %v452 = vadd.f32 %v450, %v451
    %v453 = vadd.f32 %v295, %v299
    %v454 = vrot.slane %v453, 4
    %v455 = vadd.f32 %v453, %v454
    %v456 = vrot.slane %v455, 2
    %v457 = vadd.f32 %v455, %v456
    %v458 = vrot.slane %v457, 1
    %v459 = vadd.f32 %v457, %v458
    %v460 = vadd.f32 %v297, %v301
    %v461 = vrot.slane %v460, 4
    %v462 = vadd.f32 %v460, %v461
    %v463 = vrot.slane %v462, 2
    %v464 = vadd.f32 %v462, %v463
    %v465 = vrot.slane %v464, 1
    %v466 = vadd.f32 %v464, %v465
    %v467 = vadd.f32 %v338, %v342
    %v468 = vrot.slane %v467, 4
    %v469 = vadd.f32 %v467, %v468
    %v470 = vrot.slane %v469, 2
    %v471 = vadd.f32 %v469, %v470
    %v472 = vrot.slane %v471, 1
    %v473 = vadd.f32 %v471, %v472
    %v474 = vadd.f32 %v340, %v344
    %v475 = vrot.slane %v474, 4
    %v476 = vadd.f32 %v474, %v475
    %v477 = vrot.slane %v476, 2
    %v478 = vadd.f32 %v476, %v477
    %v479 = vrot.slane %v478, 1
    %v480 = vadd.f32 %v478, %v479
    %v481 = vadd.f32 %v381, %v385
    %v482 = vrot.slane %v481, 4
    %v483 = vadd.f32 %v481, %v482
    %v484 = vrot.slane %v483, 2
    %v485 = vadd.f32 %v483, %v484
    %v486 = vrot.slane %v485, 1
    %v487 = vadd.f32 %v485, %v486
    %v488 = vadd.f32 %v383, %v387
    %v489 = vrot.slane %v488, 4
    %v490 = vadd.f32 %v488, %v489
    %v491 = vrot.slane %v490, 2
    %v492 = vadd.f32 %v490, %v491
    %v493 = vrot.slane %v492, 1
    %v494 = vadd.f32 %v492, %v493
    %v495 = vadd.f32 %v424, %v428
    %v496 = vrot.slane %v495, 4
    %v497 = vadd.f32 %v495, %v496
    %v498 = vrot.slane %v497, 2
    %v499 = vadd.f32 %v497, %v498
    %v500 = vrot.slane %v499, 1
    %v501 = vadd.f32 %v499, %v500
    %v502 = vadd.f32 %v426, %v430
    %v503 = vrot.slane %v502, 4
    %v504 = vadd.f32 %v502, %v503
    %v505 = vrot.slane %v504, 2
    %v506 = vadd.f32 %v504, %v505
    %v507 = vrot.slane %v506, 1
    %v508 = vadd.f32 %v506, %v507
    %v509 = vmul.f32 %v252, %v252
    %v510 = vmul.f32 %v254, %v254
    %v511 = vmul.f32 %v295, %v295
    %v512 = vmul.f32 %v297, %v297
    %v513 = vmul.f32 %v338, %v338
    %v514 = vmul.f32 %v340, %v340
    %v515 = vmul.f32 %v381, %v381
    %v516 = vmul.f32 %v383, %v383
    %v517 = vmul.f32 %v424, %v424
    %v518 = vmul.f32 %v426, %v426
    %v519 = vmul.f32 %v256, %v256
    %v520 = vmul.f32 %v258, %v258
    %v521 = vmul.f32 %v299, %v299
    %v522 = vmul.f32 %v301, %v301
    %v523 = vmul.f32 %v342, %v342
    %v524 = vmul.f32 %v344, %v344
    %v525 = vmul.f32 %v385, %v385
    %v526 = vmul.f32 %v387, %v387
    %v527 = vmul.f32 %v428, %v428
    %v528 = vmul.f32 %v430, %v430
    %v529 = vadd.f32 %v509, %v519
    %v530 = vrot.slane %v529, 4
    %v531 = vadd.f32 %v529, %v530
    %v532 = vrot.slane %v531, 2
    %v533 = vadd.f32 %v531, %v532
    %v534 = vrot.slane %v533, 1
    %v535 = vadd.f32 %v533, %v534
    %v536 = vadd.f32 %v510, %v520
    %v537 = vrot.slane %v536, 4
    %v538 = vadd.f32 %v536, %v537
    %v539 = vrot.slane %v538, 2
    %v540 = vadd.f32 %v538, %v539
    %v541 = vrot.slane %v540, 1
    %v542 = vadd.f32 %v540, %v541
    %v543 = vadd.f32 %v511, %v521
    %v544 = vrot.slane %v543, 4
    %v545 = vadd.f32 %v543, %v544
    %v546 = vrot.slane %v545, 2
    %v547 = vadd.f32 %v545, %v546
    %v548 = vrot.slane %v547, 1
    %v549 = vadd.f32 %v547, %v548
    %v550 = vadd.f32 %v512, %v522
    %v551 = vrot.slane %v550, 4
    %v552 = vadd.f32 %v550, %v551
    %v553 = vrot.slane %v552, 2
    %v554 = vadd.f32 %v552, %v553
    %v555 = vrot.slane %v554, 1
    %v556 = vadd.f32 %v554, %v555
    %v557 = vadd.f32 %v513, %v523
    %v558 = vrot.slane %v557, 4
    %v559 = vadd.f32 %v557, %v558
    %v560 = vrot.slane %v559, 2
    %v561 = vadd.f32 %v559, %v560
    %v562 = vrot.slane %v561, 1
    %v563 = vadd.f32 %v561, %v562
    %v564 = vadd.f32 %v514, %v524
    %v565 = vrot.slane %v564, 4
    %v566 = vadd.f32 %v564, %v565
    %v567 = vrot.slane %v566, 2
    %v568 = vadd.f32 %v566, %v567
    %v569 = vrot.slane %v568, 1
    %v570 = vadd.f32 %v568, %v569
    %v571 = vadd.f32 %v515, %v525
    %v572 = vrot.slane %v571, 4
    %v573 = vadd.f32 %v571, %v572
    %v574 = vrot.slane %v573, 2
    %v575 = vadd.f32 %v573, %v574
    %v576 = vrot.slane %v575, 1
    %v577 = vadd.f32 %v575, %v576
    %v578 = vadd.f32 %v516, %v526
    %v579 = vrot.slane %v578, 4
    %v580 = vadd.f32 %v578, %v579
    %v581 = vrot.slane %v580, 2
    %v582 = vadd.f32 %v580, %v581
    %v583 = vrot.slane %v582, 1
    %v584 = vadd.f32 %v582, %v583
    %v585 = vadd.f32 %v517, %v527
    %v586 = vrot.slane %v585, 4
    %v587 = vadd.f32 %v585, %v586
    %v588 = vrot.slane %v587, 2
    %v589 = vadd.f32 %v587, %v588
    %v590 = vrot.slane %v589, 1
    %v591 = vadd.f32 %v589, %v590
    %v592 = vadd.f32 %v518, %v528
    %v593 = vrot.slane %v592, 4
    %v594 = vadd.f32 %v592, %v593
    %v595 = vrot.slane %v594, 2
    %v596 = vadd.f32 %v594, %v595
    %v597 = vrot.slane %v596, 1
    %v598 = vadd.f32 %v596, %v597
    %v599 = vmul.f32 %v445, 0.125
    %v600 = vmul.f32 %v452, 0.125
    %v601 = vmul.f32 %v459, 0.125
    %v602 = vmul.f32 %v466, 0.125
    %v603 = vmul.f32 %v473, 0.125
    %v604 = vmul.f32 %v480, 0.125
    %v605 = vmul.f32 %v487, 0.125
    %v606 = vmul.f32 %v494, 0.125
    %v607 = vmul.f32 %v501, 0.125
    %v608 = vmul.f32 %v508, 0.125
    %v609 = vmul.f32 %v535, 0.125
    %v610 = vmul.f32 %v542, 0.125
    %v611 = vmul.f32 %v549, 0.125
    %v612 = vmul.f32 %v556, 0.125
    %v613 = vmul.f32 %v563, 0.125
    %v614 = vmul.f32 %v570, 0.125
    %v615 = vmul.f32 %v577, 0.125
    %v616 = vmul.f32 %v584, 0.125
    %v617 = vmul.f32 %v591, 0.125
    %v618 = vmul.f32 %v598, 0.125
    %v619 = vmul.f32 %v599, %v599
    %v620 = vmul.f32 %v600, %v600
    %v621 = vmul.f32 %v601, %v601
    %v622 = vmul.f32 %v602, %v602
    %v623 = vmul.f32 %v603, %v603
    %v624 = vmul.f32 %v604, %v604
    %v625 = vmul.f32 %v605, %v605
    %v626 = vmul.f32 %v606, %v606
    %v627 = vmul.f32 %v607, %v607
    %v628 = vmul.f32 %v608, %v608
    %v629 = vsub.f32 %v609, %v619
    %v630 = vsub.f32 %v610, %v620
    %v631 = vsub.f32 %v611, %v621
    %v632 = vsub.f32 %v612, %v622
    %v633 = vsub.f32 %v613, %v623
    %v634 = vsub.f32 %v614, %v624
    %v635 = vsub.f32 %v615, %v625
    %v636 = vsub.f32 %v616, %v626
    %v637 = vsub.f32 %v617, %v627
    %v638 = vsub.f32 %v618, %v628
    %v639 = vmax.f32 %v629, 0.0
    %v640 = vmax.f32 %v630, 0.0
    %v641 = vmax.f32 %v631, 0.0
    %v642 = vmax.f32 %v632, 0.0
    %v643 = vmax.f32 %v633, 0.0
    %v644 = vmax.f32 %v634, 0.0
    %v645 = vmax.f32 %v635, 0.0
    %v646 = vmax.f32 %v636, 0.0
    %v647 = vmax.f32 %v637, 0.0
    %v648 = vmax.f32 %v638, 0.0
    %v649 = vadd.f32 %v639, 1e-05
    %v650 = vadd.f32 %v640, 1e-05
    %v651 = vadd.f32 %v641, 1e-05
    %v652 = vadd.f32 %v642, 1e-05
    %v653 = vadd.f32 %v643, 1e-05
    %v654 = vadd.f32 %v644, 1e-05
    %v655 = vadd.f32 %v645, 1e-05
    %v656 = vadd.f32 %v646, 1e-05
    %v657 = vadd.f32 %v647, 1e-05
    %v658 = vadd.f32 %v648, 1e-05
    %v659 = vrsqrt.pop %v649
    %v660 = vrsqrt.pop %v650
    %v661 = vrsqrt.pop %v651
    %v662 = vrsqrt.pop %v652
    %v663 = vrsqrt.pop %v653
    %v664 = vrsqrt.pop %v654
    %v665 = vrsqrt.pop %v655
    %v666 = vrsqrt.pop %v656
    %v667 = vrsqrt.pop %v657
    %v668 = vrsqrt.pop %v658
    %v679 = vcombine.low %v659, %v660
    %v680 = vcombine.low %v661, %v662
    %v681 = vcombine.low %v663, %v664
    %v682 = vcombine.low %v665, %v666
    %v684 = vunpack.c.l.s4 1966171168
    %v685 = vunpack.c.0.s8 %v684
    %v686 = vlaneseq
    %v687 = vshrl.u32 %v686, 7
    %v688 = vsub.s32 %v685, %v687
    %v689 = vrot.slane %v679, %v688
    %v691 = vunpack.c.l.s4 1966171168
    %v692 = vunpack.c.0.s8 %v691
    %v693 = vlaneseq
    %v694 = vshrl.u32 %v693, 7
    %v695 = vsub.s32 %v692, %v694
    %v696 = vrot.slane %v680, %v695
    %v698 = vunpack.c.l.s4 1966171168
    %v699 = vunpack.c.0.s8 %v698
    %v700 = vlaneseq
    %v701 = vshrl.u32 %v700, 7
    %v702 = vsub.s32 %v699, %v701
    %v703 = vrot.slane %v681, %v702
    %v705 = vunpack.c.l.s4 1966171168
    %v706 = vunpack.c.0.s8 %v705
    %v707 = vlaneseq
    %v708 = vshrl.u32 %v707, 7
    %v709 = vsub.s32 %v706, %v708
    %v710 = vrot.slane %v682, %v709
    %v711 = vcombine.low %v689, %v696
    %v712 = vcombine.low %v703, %v710
    %v714 = vunpack.c.l.s4 1966171168
    %v715 = vunpack.c.0.s8 %v714
    %v716 = vlaneseq
    %v717 = vshrl.u32 %v716, 7
    %v718 = vsub.s32 %v715, %v717
    %v719 = vrot.slane %v711, %v718
    %v721 = vunpack.c.l.s4 1966171168
    %v722 = vunpack.c.0.s8 %v721
    %v723 = vlaneseq
    %v724 = vshrl.u32 %v723, 7
    %v725 = vsub.s32 %v722, %v724
    %v726 = vrot.slane %v712, %v725
    %v727 = vcombine.low %v719, %v726
    %v728 = vcombine.low %v667, %v668
    %v730 = vunpack.c.l.s4 1966171168
    %v731 = vunpack.c.0.s8 %v730
    %v732 = vlaneseq
    %v733 = vshrl.u32 %v732, 7
    %v734 = vsub.s32 %v731, %v733
    %v735 = vrot.slane %v728, %v734
    %v737 = vunpack.c.l.s4 1966171168
    %v738 = vunpack.c.0.s8 %v737
    %v739 = vlaneseq
    %v740 = vshrl.u32 %v739, 7
    %v741 = vsub.s32 %v738, %v740
    %v742 = vrot.slane %v735, %v741
    %v745 = vmul.f32 %v432, %v727
    %v746 = vmul.f32 %v434, %v742
    %v749 = vlaneseq
    %v750 = vshrl.u32 %v749, 7
    %v751 = vsub.s32 0, %v750
    %v752 = vrot.slane %v745, %v751
    %v753 = vlaneseq
    %v754 = vshrl.u32 %v753, 7
    %v755 = vsub.s32 1, %v754
    %v756 = vrot.slane %v745, %v755
    %v757 = vlaneseq
    %v758 = vshrl.u32 %v757, 7
    %v759 = vsub.s32 2, %v758
    %v760 = vrot.slane %v745, %v759
    %v761 = vlaneseq
    %v762 = vshrl.u32 %v761, 7
    %v763 = vsub.s32 3, %v762
    %v764 = vrot.slane %v745, %v763
    %v765 = vlaneseq
    %v766 = vshrl.u32 %v765, 7
    %v767 = vsub.s32 4, %v766
    %v768 = vrot.slane %v745, %v767
    %v769 = vlaneseq
    %v770 = vshrl.u32 %v769, 7
    %v771 = vsub.s32 5, %v770
    %v772 = vrot.slane %v745, %v771
    %v773 = vlaneseq
    %v774 = vshrl.u32 %v773, 7
    %v775 = vsub.s32 6, %v774
    %v776 = vrot.slane %v745, %v775
    %v777 = vlaneseq
    %v778 = vshrl.u32 %v777, 7
    %v779 = vsub.s32 7, %v778
    %v780 = vrot.slane %v745, %v779
    %v781 = vlaneseq
    %v782 = vshrl.u32 %v781, 7
    %v783 = vsub.s32 0, %v782
    %v784 = vrot.slane %v746, %v783
    %v785 = vlaneseq
    %v786 = vshrl.u32 %v785, 7
    %v787 = vsub.s32 1, %v786
    %v788 = vrot.slane %v746, %v787
    %v799 = vmul.f32 %v599, %v752
    %v800 = vmul.f32 %v600, %v756
    %v801 = vmul.f32 %v601, %v760
    %v802 = vmul.f32 %v602, %v764
    %v803 = vmul.f32 %v603, %v768
    %v804 = vmul.f32 %v604, %v772
    %v805 = vmul.f32 %v605, %v776
    %v806 = vmul.f32 %v606, %v780
    %v807 = vmul.f32 %v607, %v784
    %v808 = vmul.f32 %v608, %v788
    %v819 = vcombine.low %v799, %v800
    %v820 = vcombine.low %v801, %v802
    %v821 = vcombine.low %v803, %v804
    %v822 = vcombine.low %v805, %v806
    %v824 = vunpack.c.l.s4 1966171168
    %v825 = vunpack.c.0.s8 %v824
    %v826 = vlaneseq
    %v827 = vshrl.u32 %v826, 7
    %v828 = vsub.s32 %v825, %v827
    %v829 = vrot.slane %v819, %v828
    %v831 = vunpack.c.l.s4 1966171168
    %v832 = vunpack.c.0.s8 %v831
    %v833 = vlaneseq
    %v834 = vshrl.u32 %v833, 7
    %v835 = vsub.s32 %v832, %v834
    %v836 = vrot.slane %v820, %v835
    %v838 = vunpack.c.l.s4 1966171168
    %v839 = vunpack.c.0.s8 %v838
    %v840 = vlaneseq
    %v841 = vshrl.u32 %v840, 7
    %v842 = vsub.s32 %v839, %v841
    %v843 = vrot.slane %v821, %v842
    %v845 = vunpack.c.l.s4 1966171168
    %v846 = vunpack.c.0.s8 %v845
    %v847 = vlaneseq
    %v848 = vshrl.u32 %v847, 7
    %v849 = vsub.s32 %v846, %v848
    %v850 = vrot.slane %v822, %v849
    %v851 = vcombine.low %v829, %v836
    %v852 = vcombine.low %v843, %v850
    %v854 = vunpack.c.l.s4 1966171168
    %v855 = vunpack.c.0.s8 %v854
    %v856 = vlaneseq
    %v857 = vshrl.u32 %v856, 7
    %v858 = vsub.s32 %v855, %v857
    %v859 = vrot.slane %v851, %v858
    %v861 = vunpack.c.l.s4 1966171168
    %v862 = vunpack.c.0.s8 %v861
    %v863 = vlaneseq
    %v864 = vshrl.u32 %v863, 7
    %v865 = vsub.s32 %v862, %v864
    %v866 = vrot.slane %v852, %v865
    %v867 = vcombine.low %v859, %v866
    %v868 = vcombine.low %v807, %v808
    %v870 = vunpack.c.l.s4 1966171168
    %v871 = vunpack.c.0.s8 %v870
    %v872 = vlaneseq
    %v873 = vshrl.u32 %v872, 7
    %v874 = vsub.s32 %v871, %v873
    %v875 = vrot.slane %v868, %v874
    %v877 = vunpack.c.l.s4 1966171168
    %v878 = vunpack.c.0.s8 %v877
    %v879 = vlaneseq
    %v880 = vshrl.u32 %v879, 7
    %v881 = vsub.s32 %v878, %v880
    %v882 = vrot.slane %v875, %v881
    %v885 = vsub.f32 %v436, %v867
    %v886 = vsub.f32 %v438, %v882
    %v887 = vmul.f32 %v252, %v752
    %v888 = vmul.f32 %v254, %v756
    %v889 = vmul.f32 %v295, %v760
    %v890 = vmul.f32 %v297, %v764
    %v891 = vmul.f32 %v338, %v768
    %v892 = vmul.f32 %v340, %v772
    %v893 = vmul.f32 %v381, %v776
    %v894 = vmul.f32 %v383, %v780
    %v895 = vmul.f32 %v424, %v784
    %v896 = vmul.f32 %v426, %v788
    %v897 = vmul.f32 %v256, %v752
    %v898 = vmul.f32 %v258, %v756
    %v899 = vmul.f32 %v299, %v760
    %v900 = vmul.f32 %v301, %v764
    %v901 = vmul.f32 %v342, %v768
    %v902 = vmul.f32 %v344, %v772
    %v903 = vmul.f32 %v385, %v776
    %v904 = vmul.f32 %v387, %v780
    %v905 = vmul.f32 %v428, %v784
    %v906 = vmul.f32 %v430, %v788
    %v909 = vlaneseq
    %v910 = vshrl.u32 %v909, 7
    %v911 = vsub.s32 0, %v910
    %v912 = vrot.slane %v885, %v911
    %v913 = vlaneseq
    %v914 = vshrl.u32 %v913, 7
    %v915 = vsub.s32 1, %v914
    %v916 = vrot.slane %v885, %v915
    %v917 = vlaneseq
    %v918 = vshrl.u32 %v917, 7
    %v919 = vsub.s32 2, %v918
    %v920 = vrot.slane %v885, %v919
    %v921 = vlaneseq
    %v922 = vshrl.u32 %v921, 7
    %v923 = vsub.s32 3, %v922
    %v924 = vrot.slane %v885, %v923
    %v925 = vlaneseq
    %v926 = vshrl.u32 %v925, 7
    %v927 = vsub.s32 4, %v926
    %v928 = vrot.slane %v885, %v927
    %v929 = vlaneseq
    %v930 = vshrl.u32 %v929, 7
    %v931 = vsub.s32 5, %v930
    %v932 = vrot.slane %v885, %v931
    %v933 = vlaneseq
    %v934 = vshrl.u32 %v933, 7
    %v935 = vsub.s32 6, %v934
    %v936 = vrot.slane %v885, %v935
    %v937 = vlaneseq
    %v938 = vshrl.u32 %v937, 7
    %v939 = vsub.s32 7, %v938
    %v940 = vrot.slane %v885, %v939
    %v941 = vlaneseq
    %v942 = vshrl.u32 %v941, 7
    %v943 = vsub.s32 0, %v942
    %v944 = vrot.slane %v886, %v943
    %v945 = vlaneseq
    %v946 = vshrl.u32 %v945, 7
    %v947 = vsub.s32 1, %v946
    %v948 = vrot.slane %v886, %v947
    %v959 = vadd.f32 %v887, %v912
    %v960 = vadd.f32 %v888, %v916
    %v961 = vadd.f32 %v889, %v920
    %v962 = vadd.f32 %v890, %v924
    %v963 = vadd.f32 %v891, %v928
    %v964 = vadd.f32 %v892, %v932
    %v965 = vadd.f32 %v893, %v936
    %v966 = vadd.f32 %v894, %v940
    %v967 = vadd.f32 %v895, %v944
    %v968 = vadd.f32 %v896, %v948
    %v969 = vadd.f32 %v897, %v912
    %v970 = vadd.f32 %v898, %v916
    %v971 = vadd.f32 %v899, %v920
    %v972 = vadd.f32 %v900, %v924
    %v973 = vadd.f32 %v901, %v928
    %v974 = vadd.f32 %v902, %v932
    %v975 = vadd.f32 %v903, %v936
    %v976 = vadd.f32 %v904, %v940
    %v977 = vadd.f32 %v905, %v944
    %v978 = vadd.f32 %v906, %v948
    %v979 = vmax.f32 %v959, 0.0
    %v980 = vmax.f32 %v960, 0.0
    %v981 = vmax.f32 %v961, 0.0
    %v982 = vmax.f32 %v962, 0.0
    %v983 = vmax.f32 %v963, 0.0
    %v984 = vmax.f32 %v964, 0.0
    %v985 = vmax.f32 %v965, 0.0
    %v986 = vmax.f32 %v966, 0.0
    %v987 = vmax.f32 %v967, 0.0
    %v988 = vmax.f32 %v968, 0.0
    %v989 = vmax.f32 %v969, 0.0
    %v990 = vmax.f32 %v970, 0.0
    %v991 = vmax.f32 %v971, 0.0
    %v992 = vmax.f32 %v972, 0.0
    %v993 = vmax.f32 %v973, 0.0
    %v994 = vmax.f32 %v974, 0.0
    %v995 = vmax.f32 %v975, 0.0
    %v996 = vmax.f32 %v976, 0.0
    %v997 = vmax.f32 %v977, 0.0
    %v998 = vmax.f32 %v978, 0.0
    %v999 = vlaneseq
    %v1000 = vshrl.u32 %v999, 7
    %v1001 = vadd.s32 %v1000, 8
    %vm1002 = vcmp.lt.s32.totalorder %v1000, 8
    %vm1003 = vcmp.lt.s32.totalorder %v1001, 8
    %v1004 = vsel %vm1002, 1, 0
    %v1005 = vsel %vm1003, 1, 0
    %vm1006 = vcmp.eq.s32.totalorder %v1004, 1
    %vm1007 = vcmp.eq.s32.totalorder %v1005, 1
    %v1008 = vsel %vm1006, %v979, 0.0
    %v1009 = vsel %vm1006, %v980, 0.0
    %v1010 = vsel %vm1006, %v981, 0.0
    %v1011 = vsel %vm1006, %v982, 0.0
    %v1012 = vsel %vm1006, %v983, 0.0
    %v1013 = vsel %vm1006, %v984, 0.0
    %v1014 = vsel %vm1006, %v985, 0.0
    %v1015 = vsel %vm1006, %v986, 0.0
    %v1016 = vsel %vm1006, %v987, 0.0
    %v1017 = vsel %vm1006, %v988, 0.0
    %v1018 = vsel %vm1007, %v989, 0.0
    %v1019 = vsel %vm1007, %v990, 0.0
    %v1020 = vsel %vm1007, %v991, 0.0
    %v1021 = vsel %vm1007, %v992, 0.0
    %v1022 = vsel %vm1007, %v993, 0.0
    %v1023 = vsel %vm1007, %v994, 0.0
    %v1024 = vsel %vm1007, %v995, 0.0
    %v1025 = vsel %vm1007, %v996, 0.0
    %v1026 = vsel %vm1007, %v997, 0.0
    %v1027 = vsel %vm1007, %v998, 0.0
    %s1028 = smul.u32 4, 160
    %s1029 = smul.u32 %s1028, 2
    %s1030 = sshll.u32 %s1029, 4
    %1031 = dma.done [#allocation3], %s1030
    %v1032 = vpack.c.bf16 %v1018, %v1008
    %v1033 = vpack.c.bf16 %v1019, %v1009
    %v1034 = vpack.c.bf16 %v1020, %v1010
    %v1035 = vpack.c.bf16 %v1021, %v1011
    %v1036 = vpack.c.bf16 %v1022, %v1012
    %v1037 = vpack.c.bf16 %v1023, %v1013
    %v1038 = vpack.c.bf16 %v1024, %v1014
    %v1039 = vpack.c.bf16 %v1025, %v1015
    %v1040 = vpack.c.bf16 %v1026, %v1016
    %v1041 = vpack.c.bf16 %v1027, %v1017
    %v1042 = vld [vmem:[#allocation2] sm:$0xff]
    %v1043 = vld [vmem:[#allocation2 + $0x8] sm:$0xff]
    %v1044 = vld [vmem:[#allocation2 + $0x10] sm:$0xff]
    %v1045 = vld [vmem:[#allocation2 + $0x18] sm:$0xff]
    %v1046 = vld [vmem:[#allocation2 + $0x20] sm:$0xff]
    %v1047 = vld [vmem:[#allocation2 + $0x28] sm:$0xff]
    %v1048 = vld [vmem:[#allocation2 + $0x30] sm:$0xff]
    %v1049 = vld [vmem:[#allocation2 + $0x38] sm:$0xff]
    %v1050 = vld [vmem:[#allocation2 + $0x40] sm:$0xff]
    %v1051 = vld [vmem:[#allocation2 + $0x48] sm:$0xff]
    %v1052 = vld [vmem:[#allocation2 + $0x50] sm:$0xff]
    %v1053 = vld [vmem:[#allocation2 + $0x58] sm:$0xff]
    %v1054 = vld [vmem:[#allocation2 + $0x60] sm:$0xff]
    %v1055 = vld [vmem:[#allocation2 + $0x68] sm:$0xff]
    %v1056 = vld [vmem:[#allocation2 + $0x70] sm:$0xff]
    %v1057 = vld [vmem:[#allocation2 + $0x78] sm:$0xff]
    %v1058 = vld [vmem:[#allocation2 + $0x80] sm:$0xff]
    %v1059 = vld [vmem:[#allocation2 + $0x88] sm:$0xff]
    %v1060 = vld [vmem:[#allocation2 + $0x90] sm:$0xff]
    %v1061 = vld [vmem:[#allocation2 + $0x98] sm:$0xff]
    %v1062 = vld [vmem:[#allocation2 + $0xa0] sm:$0xff]
    %v1063 = vld [vmem:[#allocation2 + $0xa8] sm:$0xff]
    %v1064 = vld [vmem:[#allocation2 + $0xb0] sm:$0xff]
    %v1065 = vld [vmem:[#allocation2 + $0xb8] sm:$0xff]
    %v1066 = vld [vmem:[#allocation2 + $0xc0] sm:$0xff]
    %v1067 = vld [vmem:[#allocation2 + $0xc8] sm:$0xff]
    %v1068 = vld [vmem:[#allocation2 + $0xd0] sm:$0xff]
    %v1069 = vld [vmem:[#allocation2 + $0xd8] sm:$0xff]
    %v1070 = vld [vmem:[#allocation2 + $0xe0] sm:$0xff]
    %v1071 = vld [vmem:[#allocation2 + $0xe8] sm:$0xff]
    %v1072 = vld [vmem:[#allocation2 + $0xf0] sm:$0xff]
    %v1073 = vld [vmem:[#allocation2 + $0xf8] sm:$0xff]
    %v1074 = vld [vmem:[#allocation2 + $0x100] sm:$0xff]
    %v1075 = vld [vmem:[#allocation2 + $0x108] sm:$0xff]
    %v1076 = vld [vmem:[#allocation2 + $0x110] sm:$0xff]
    %v1077 = vld [vmem:[#allocation2 + $0x118] sm:$0xff]
    %v1078 = vld [vmem:[#allocation2 + $0x120] sm:$0xff]
    %v1079 = vld [vmem:[#allocation2 + $0x128] sm:$0xff]
    %v1080 = vld [vmem:[#allocation2 + $0x130] sm:$0xff]
    %v1081 = vld [vmem:[#allocation2 + $0x138] sm:$0xff]
    %v1082 = vld [vmem:[#allocation2 + $0x140] sm:$0xff]
    %v1083 = vld [vmem:[#allocation2 + $0x148] sm:$0xff]
    %v1084 = vld [vmem:[#allocation2 + $0x150] sm:$0xff]
    %v1085 = vld [vmem:[#allocation2 + $0x158] sm:$0xff]
    %v1086 = vld [vmem:[#allocation2 + $0x160] sm:$0xff]
    %v1087 = vld [vmem:[#allocation2 + $0x168] sm:$0xff]
    %v1088 = vld [vmem:[#allocation2 + $0x170] sm:$0xff]
    %v1089 = vld [vmem:[#allocation2 + $0x178] sm:$0xff]
    %v1090 = vld [vmem:[#allocation2 + $0x180] sm:$0xff]
    %v1091 = vld [vmem:[#allocation2 + $0x188] sm:$0xff]
    %v1092 = vld [vmem:[#allocation2 + $0x190] sm:$0xff]
    %v1093 = vld [vmem:[#allocation2 + $0x198] sm:$0xff]
    %v1094 = vld [vmem:[#allocation2 + $0x1a0] sm:$0xff]
    %v1095 = vld [vmem:[#allocation2 + $0x1a8] sm:$0xff]
    %v1096 = vld [vmem:[#allocation2 + $0x1b0] sm:$0xff]
    %v1097 = vld [vmem:[#allocation2 + $0x1b8] sm:$0xff]
    %v1098 = vld [vmem:[#allocation2 + $0x1c0] sm:$0xff]
    %v1099 = vld [vmem:[#allocation2 + $0x1c8] sm:$0xff]
    %v1100 = vld [vmem:[#allocation2 + $0x1d0] sm:$0xff]
    %v1101 = vld [vmem:[#allocation2 + $0x1d8] sm:$0xff]
    %v1102 = vld [vmem:[#allocation2 + $0x1e0] sm:$0xff]
    %v1103 = vld [vmem:[#allocation2 + $0x1e8] sm:$0xff]
    %v1104 = vld [vmem:[#allocation2 + $0x1f0] sm:$0xff]
    %v1105 = vld [vmem:[#allocation2 + $0x1f8] sm:$0xff]
    %v1106 = vld [vmem:[#allocation2 + $0x200] sm:$0xff]
    %v1107 = vld [vmem:[#allocation2 + $0x208] sm:$0xff]
    %v1108 = vld [vmem:[#allocation2 + $0x210] sm:$0xff]
    %v1109 = vld [vmem:[#allocation2 + $0x218] sm:$0xff]
    %v1110 = vld [vmem:[#allocation2 + $0x220] sm:$0xff]
    %v1111 = vld [vmem:[#allocation2 + $0x228] sm:$0xff]
    %v1112 = vld [vmem:[#allocation2 + $0x230] sm:$0xff]
    %v1113 = vld [vmem:[#allocation2 + $0x238] sm:$0xff]
    %v1114 = vld [vmem:[#allocation2 + $0x240] sm:$0xff]
    %v1115 = vld [vmem:[#allocation2 + $0x248] sm:$0xff]
    %v1116 = vld [vmem:[#allocation2 + $0x250] sm:$0xff]
    %v1117 = vld [vmem:[#allocation2 + $0x258] sm:$0xff]
    %v1118 = vld [vmem:[#allocation2 + $0x260] sm:$0xff]
    %v1119 = vld [vmem:[#allocation2 + $0x268] sm:$0xff]
    %v1120 = vld [vmem:[#allocation2 + $0x270] sm:$0xff]
    %v1121 = vld [vmem:[#allocation2 + $0x278] sm:$0xff]
    %v1122 = vld [vmem:[#allocation2 + $0x280] sm:$0xff]
    %v1123 = vld [vmem:[#allocation2 + $0x288] sm:$0xff]
    %v1124 = vld [vmem:[#allocation2 + $0x290] sm:$0xff]
    %v1125 = vld [vmem:[#allocation2 + $0x298] sm:$0xff]
    %v1126 = vld [vmem:[#allocation2 + $0x2a0] sm:$0xff]
    %v1127 = vld [vmem:[#allocation2 + $0x2a8] sm:$0xff]
    %v1128 = vld [vmem:[#allocation2 + $0x2b0] sm:$0xff]
    %v1129 = vld [vmem:[#allocation2 + $0x2b8] sm:$0xff]
    %v1130 = vld [vmem:[#allocation2 + $0x2c0] sm:$0xff]
    %v1131 = vld [vmem:[#allocation2 + $0x2c8] sm:$0xff]
    %v1132 = vld [vmem:[#allocation2 + $0x2d0] sm:$0xff]
    %v1133 = vld [vmem:[#allocation2 + $0x2d8] sm:$0xff]
    %v1134 = vld [vmem:[#allocation2 + $0x2e0] sm:$0xff]
    %v1135 = vld [vmem:[#allocation2 + $0x2e8] sm:$0xff]
    %v1136 = vld [vmem:[#allocation2 + $0x2f0] sm:$0xff]
    %v1137 = vld [vmem:[#allocation2 + $0x2f8] sm:$0xff]
    %v1138 = vld [vmem:[#allocation2 + $0x300] sm:$0xff]
    %v1139 = vld [vmem:[#allocation2 + $0x308] sm:$0xff]
    %v1140 = vld [vmem:[#allocation2 + $0x310] sm:$0xff]
    %v1141 = vld [vmem:[#allocation2 + $0x318] sm:$0xff]
    %v1142 = vld [vmem:[#allocation2 + $0x320] sm:$0xff]
    %v1143 = vld [vmem:[#allocation2 + $0x328] sm:$0xff]
    %v1144 = vld [vmem:[#allocation2 + $0x330] sm:$0xff]
    %v1145 = vld [vmem:[#allocation2 + $0x338] sm:$0xff]
    %v1146 = vld [vmem:[#allocation2 + $0x340] sm:$0xff]
    %v1147 = vld [vmem:[#allocation2 + $0x348] sm:$0xff]
    %v1148 = vld [vmem:[#allocation2 + $0x350] sm:$0xff]
    %v1149 = vld [vmem:[#allocation2 + $0x358] sm:$0xff]
    %v1150 = vld [vmem:[#allocation2 + $0x360] sm:$0xff]
    %v1151 = vld [vmem:[#allocation2 + $0x368] sm:$0xff]
    %v1152 = vld [vmem:[#allocation2 + $0x370] sm:$0xff]
    %v1153 = vld [vmem:[#allocation2 + $0x378] sm:$0xff]
    %v1154 = vld [vmem:[#allocation2 + $0x380] sm:$0xff]
    %v1155 = vld [vmem:[#allocation2 + $0x388] sm:$0xff]
    %v1156 = vld [vmem:[#allocation2 + $0x390] sm:$0xff]
    %v1157 = vld [vmem:[#allocation2 + $0x398] sm:$0xff]
    %v1158 = vld [vmem:[#allocation2 + $0x3a0] sm:$0xff]
    %v1159 = vld [vmem:[#allocation2 + $0x3a8] sm:$0xff]
    %v1160 = vld [vmem:[#allocation2 + $0x3b0] sm:$0xff]
    %v1161 = vld [vmem:[#allocation2 + $0x3b8] sm:$0xff]
    %v1162 = vld [vmem:[#allocation2 + $0x3c0] sm:$0xff]
    %v1163 = vld [vmem:[#allocation2 + $0x3c8] sm:$0xff]
    %v1164 = vld [vmem:[#allocation2 + $0x3d0] sm:$0xff]
    %v1165 = vld [vmem:[#allocation2 + $0x3d8] sm:$0xff]
    %v1166 = vld [vmem:[#allocation2 + $0x3e0] sm:$0xff]
    %v1167 = vld [vmem:[#allocation2 + $0x3e8] sm:$0xff]
    %v1168 = vld [vmem:[#allocation2 + $0x3f0] sm:$0xff]
    %v1169 = vld [vmem:[#allocation2 + $0x3f8] sm:$0xff]
    %v1170 = vld [vmem:[#allocation2 + $0x400] sm:$0xff]
    %v1171 = vld [vmem:[#allocation2 + $0x408] sm:$0xff]
    %v1172 = vld [vmem:[#allocation2 + $0x410] sm:$0xff]
    %v1173 = vld [vmem:[#allocation2 + $0x418] sm:$0xff]
    %v1174 = vld [vmem:[#allocation2 + $0x420] sm:$0xff]
    %v1175 = vld [vmem:[#allocation2 + $0x428] sm:$0xff]
    %v1176 = vld [vmem:[#allocation2 + $0x430] sm:$0xff]
    %v1177 = vld [vmem:[#allocation2 + $0x438] sm:$0xff]
    %v1178 = vld [vmem:[#allocation2 + $0x440] sm:$0xff]
    %v1179 = vld [vmem:[#allocation2 + $0x448] sm:$0xff]
    %v1180 = vld [vmem:[#allocation2 + $0x450] sm:$0xff]
    %v1181 = vld [vmem:[#allocation2 + $0x458] sm:$0xff]
    %v1182 = vld [vmem:[#allocation2 + $0x460] sm:$0xff]
    %v1183 = vld [vmem:[#allocation2 + $0x468] sm:$0xff]
    %v1184 = vld [vmem:[#allocation2 + $0x470] sm:$0xff]
    %v1185 = vld [vmem:[#allocation2 + $0x478] sm:$0xff]
    %v1186 = vld [vmem:[#allocation2 + $0x480] sm:$0xff]
    %v1187 = vld [vmem:[#allocation2 + $0x488] sm:$0xff]
    %v1188 = vld [vmem:[#allocation2 + $0x490] sm:$0xff]
    %v1189 = vld [vmem:[#allocation2 + $0x498] sm:$0xff]
    %v1190 = vld [vmem:[#allocation2 + $0x4a0] sm:$0xff]
    %v1191 = vld [vmem:[#allocation2 + $0x4a8] sm:$0xff]
    %v1192 = vld [vmem:[#allocation2 + $0x4b0] sm:$0xff]
    %v1193 = vld [vmem:[#allocation2 + $0x4b8] sm:$0xff]
    %v1194 = vld [vmem:[#allocation2 + $0x4c0] sm:$0xff]
    %v1195 = vld [vmem:[#allocation2 + $0x4c8] sm:$0xff]
    %v1196 = vld [vmem:[#allocation2 + $0x4d0] sm:$0xff]
    %v1197 = vld [vmem:[#allocation2 + $0x4d8] sm:$0xff]
    %v1198 = vld [vmem:[#allocation2 + $0x4e0] sm:$0xff]
    %v1199 = vld [vmem:[#allocation2 + $0x4e8] sm:$0xff]
    %v1200 = vld [vmem:[#allocation2 + $0x4f0] sm:$0xff]
    %v1201 = vld [vmem:[#allocation2 + $0x4f8] sm:$0xff]
    %1202 = vmatprep.subr.bf16.mxu0 %v1043
    %1203 = vmatpush1.bf16.msra.mxu0 %v1042
    %1204 = vmatprep.subr.bf16.mxu0 %v1045
    %1205 = vmatpush1.bf16.msra.mxu0 %v1044
    %1206 = vmatprep.subr.bf16.mxu0 %v1047
    %1207 = vmatpush1.bf16.msra.mxu0 %v1046
    %1208 = vmatprep.subr.bf16.mxu0 %v1049
    %1209 = vmatpush1.bf16.msra.mxu0 %v1048
    %1210 = vmatprep.subr.bf16.mxu0 %v1051
    %1211 = vmatpush1.bf16.msra.mxu0 %v1050
    %1212 = vmatprep.subr.bf16.mxu0 %v1053
    %1213 = vmatpush1.bf16.msra.mxu0 %v1052
    %1214 = vmatprep.subr.bf16.mxu0 %v1055
    %1215 = vmatpush1.bf16.msra.mxu0 %v1054
    %1216 = vmatprep.subr.bf16.mxu0 %v1057
    %1217 = vmatpush1.bf16.msra.mxu0 %v1056
    %1218 = vmatprep.subr.bf16.mxu0 %v1059
    %1219 = vmatpush1.bf16.msra.mxu0 %v1058
    %1220 = vmatprep.subr.bf16.mxu0 %v1061
    %1221 = vmatpush1.bf16.msra.mxu0 %v1060
    %1222 = vmatprep.subr.bf16.mxu0 %v1063
    %1223 = vmatpush1.bf16.msra.mxu0 %v1062
    %1224 = vmatprep.subr.bf16.mxu0 %v1065
    %1225 = vmatpush1.bf16.msra.mxu0 %v1064
    %1226 = vmatprep.subr.bf16.mxu0 %v1067
    %1227 = vmatpush1.bf16.msra.mxu0 %v1066
    %1228 = vmatprep.subr.bf16.mxu0 %v1069
    %1229 = vmatpush1.bf16.msra.mxu0 %v1068
    %1230 = vmatprep.subr.bf16.mxu0 %v1071
    %1231 = vmatpush1.bf16.msra.mxu0 %v1070
    %1232 = vmatprep.subr.bf16.mxu0 %v1073
    %1233 = vmatpush1.bf16.msra.mxu0 %v1072
    %1234 = vmatprep.mubr.bf16.mxu0 %v1033
    %1235 = vmatmul.mubr.bf16.gmra.mrb[0].mxu0 %v1032
    %v1236 = vpop.f32.mrb[0].mxu0
    %v1237 = vadd.f32 0.0, %v1236
    %v1238 = vpop.f32.mrb[0].mxu0
    %v1239 = vadd.f32 0.0, %v1238
    %v1240 = vpop.f32.mrb[0].mxu0
    %v1241 = vadd.f32 0.0, %v1240
    %v1242 = vpop.f32.mrb[0].mxu0
    %v1243 = vadd.f32 0.0, %v1242
    %1244 = vdwg.mxu0
    %1245 = vmatprep.subr.bf16.mxu0 %v1075
    %1246 = vmatpush1.bf16.msra.mxu0 %v1074
    %1247 = vmatprep.subr.bf16.mxu0 %v1077
    %1248 = vmatpush1.bf16.msra.mxu0 %v1076
    %1249 = vmatprep.subr.bf16.mxu0 %v1079
    %1250 = vmatpush1.bf16.msra.mxu0 %v1078
    %1251 = vmatprep.subr.bf16.mxu0 %v1081
    %1252 = vmatpush1.bf16.msra.mxu0 %v1080
    %1253 = vmatprep.subr.bf16.mxu0 %v1083
    %1254 = vmatpush1.bf16.msra.mxu0 %v1082
    %1255 = vmatprep.subr.bf16.mxu0 %v1085
    %1256 = vmatpush1.bf16.msra.mxu0 %v1084
    %1257 = vmatprep.subr.bf16.mxu0 %v1087
    %1258 = vmatpush1.bf16.msra.mxu0 %v1086
    %1259 = vmatprep.subr.bf16.mxu0 %v1089
    %1260 = vmatpush1.bf16.msra.mxu0 %v1088
    %1261 = vmatprep.subr.bf16.mxu0 %v1091
    %1262 = vmatpush1.bf16.msra.mxu0 %v1090
    %1263 = vmatprep.subr.bf16.mxu0 %v1093
    %1264 = vmatpush1.bf16.msra.mxu0 %v1092
    %1265 = vmatprep.subr.bf16.mxu0 %v1095
    %1266 = vmatpush1.bf16.msra.mxu0 %v1094
    %1267 = vmatprep.subr.bf16.mxu0 %v1097
    %1268 = vmatpush1.bf16.msra.mxu0 %v1096
    %1269 = vmatprep.subr.bf16.mxu0 %v1099
    %1270 = vmatpush1.bf16.msra.mxu0 %v1098
    %1271 = vmatprep.subr.bf16.mxu0 %v1101
    %1272 = vmatpush1.bf16.msra.mxu0 %v1100
    %1273 = vmatprep.subr.bf16.mxu0 %v1103
    %1274 = vmatpush1.bf16.msra.mxu0 %v1102
    %1275 = vmatprep.subr.bf16.mxu0 %v1105
    %1276 = vmatpush1.bf16.msra.mxu0 %v1104
    %1277 = vmatprep.mubr.bf16.mxu0 %v1035
    %1278 = vmatmul.mubr.bf16.gmra.mrb[0].mxu0 %v1034
    %v1279 = vpop.f32.mrb[0].mxu0
    %v1280 = vadd.f32 %v1237, %v1279
    %v1281 = vpop.f32.mrb[0].mxu0
    %v1282 = vadd.f32 %v1239, %v1281
    %v1283 = vpop.f32.mrb[0].mxu0
    %v1284 = vadd.f32 %v1241, %v1283
    %v1285 = vpop.f32.mrb[0].mxu0
    %v1286 = vadd.f32 %v1243, %v1285
    %1287 = vdwg.mxu0
    %1288 = vmatprep.subr.bf16.mxu0 %v1107
    %1289 = vmatpush1.bf16.msra.mxu0 %v1106
    %1290 = vmatprep.subr.bf16.mxu0 %v1109
    %1291 = vmatpush1.bf16.msra.mxu0 %v1108
    %1292 = vmatprep.subr.bf16.mxu0 %v1111
    %1293 = vmatpush1.bf16.msra.mxu0 %v1110
    %1294 = vmatprep.subr.bf16.mxu0 %v1113
    %1295 = vmatpush1.bf16.msra.mxu0 %v1112
    %1296 = vmatprep.subr.bf16.mxu0 %v1115
    %1297 = vmatpush1.bf16.msra.mxu0 %v1114
    %1298 = vmatprep.subr.bf16.mxu0 %v1117
    %1299 = vmatpush1.bf16.msra.mxu0 %v1116
    %1300 = vmatprep.subr.bf16.mxu0 %v1119
    %1301 = vmatpush1.bf16.msra.mxu0 %v1118
    %1302 = vmatprep.subr.bf16.mxu0 %v1121
    %1303 = vmatpush1.bf16.msra.mxu0 %v1120
    %1304 = vmatprep.subr.bf16.mxu0 %v1123
    %1305 = vmatpush1.bf16.msra.mxu0 %v1122
    %1306 = vmatprep.subr.bf16.mxu0 %v1125
    %1307 = vmatpush1.bf16.msra.mxu0 %v1124
    %1308 = vmatprep.subr.bf16.mxu0 %v1127
    %1309 = vmatpush1.bf16.msra.mxu0 %v1126
    %1310 = vmatprep.subr.bf16.mxu0 %v1129
    %1311 = vmatpush1.bf16.msra.mxu0 %v1128
    %1312 = vmatprep.subr.bf16.mxu0 %v1131
    %1313 = vmatpush1.bf16.msra.mxu0 %v1130
    %1314 = vmatprep.subr.bf16.mxu0 %v1133
    %1315 = vmatpush1.bf16.msra.mxu0 %v1132
    %1316 = vmatprep.subr.bf16.mxu0 %v1135
    %1317 = vmatpush1.bf16.msra.mxu0 %v1134
    %1318 = vmatprep.subr.bf16.mxu0 %v1137
    %1319 = vmatpush1.bf16.msra.mxu0 %v1136
    %1320 = vmatprep.mubr.bf16.mxu0 %v1037
    %1321 = vmatmul.mubr.bf16.gmra.mrb[0].mxu0 %v1036
    %v1322 = vpop.f32.mrb[0].mxu0
    %v1323 = vadd.f32 %v1280, %v1322
    %v1324 = vpop.f32.mrb[0].mxu0
    %v1325 = vadd.f32 %v1282, %v1324
    %v1326 = vpop.f32.mrb[0].mxu0
    %v1327 = vadd.f32 %v1284, %v1326
    %v1328 = vpop.f32.mrb[0].mxu0
    %v1329 = vadd.f32 %v1286, %v1328
    %1330 = vdwg.mxu0
    %1331 = vmatprep.subr.bf16.mxu0 %v1139
    %1332 = vmatpush1.bf16.msra.mxu0 %v1138
    %1333 = vmatprep.subr.bf16.mxu0 %v1141
    %1334 = vmatpush1.bf16.msra.mxu0 %v1140
    %1335 = vmatprep.subr.bf16.mxu0 %v1143
    %1336 = vmatpush1.bf16.msra.mxu0 %v1142
    %1337 = vmatprep.subr.bf16.mxu0 %v1145
    %1338 = vmatpush1.bf16.msra.mxu0 %v1144
    %1339 = vmatprep.subr.bf16.mxu0 %v1147
    %1340 = vmatpush1.bf16.msra.mxu0 %v1146
    %1341 = vmatprep.subr.bf16.mxu0 %v1149
    %1342 = vmatpush1.bf16.msra.mxu0 %v1148
    %1343 = vmatprep.subr.bf16.mxu0 %v1151
    %1344 = vmatpush1.bf16.msra.mxu0 %v1150
    %1345 = vmatprep.subr.bf16.mxu0 %v1153
    %1346 = vmatpush1.bf16.msra.mxu0 %v1152
    %1347 = vmatprep.subr.bf16.mxu0 %v1155
    %1348 = vmatpush1.bf16.msra.mxu0 %v1154
    %1349 = vmatprep.subr.bf16.mxu0 %v1157
    %1350 = vmatpush1.bf16.msra.mxu0 %v1156
    %1351 = vmatprep.subr.bf16.mxu0 %v1159
    %1352 = vmatpush1.bf16.msra.mxu0 %v1158
    %1353 = vmatprep.subr.bf16.mxu0 %v1161
    %1354 = vmatpush1.bf16.msra.mxu0 %v1160
    %1355 = vmatprep.subr.bf16.mxu0 %v1163
    %1356 = vmatpush1.bf16.msra.mxu0 %v1162
    %1357 = vmatprep.subr.bf16.mxu0 %v1165
    %1358 = vmatpush1.bf16.msra.mxu0 %v1164
    %1359 = vmatprep.subr.bf16.mxu0 %v1167
    %1360 = vmatpush1.bf16.msra.mxu0 %v1166
    %1361 = vmatprep.subr.bf16.mxu0 %v1169
    %1362 = vmatpush1.bf16.msra.mxu0 %v1168
    %1363 = vmatprep.mubr.bf16.mxu0 %v1039
    %1364 = vmatmul.mubr.bf16.gmra.mrb[0].mxu0 %v1038
    %v1365 = vpop.f32.mrb[0].mxu0
    %v1366 = vadd.f32 %v1323, %v1365
    %v1367 = vpop.f32.mrb[0].mxu0
    %v1368 = vadd.f32 %v1325, %v1367
    %v1369 = vpop.f32.mrb[0].mxu0
    %v1370 = vadd.f32 %v1327, %v1369
    %v1371 = vpop.f32.mrb[0].mxu0
    %v1372 = vadd.f32 %v1329, %v1371
    %1373 = vdwg.mxu0
    %1374 = vmatprep.subr.bf16.mxu0 %v1171
    %1375 = vmatpush1.bf16.msra.mxu0 %v1170
    %1376 = vmatprep.subr.bf16.mxu0 %v1173
    %1377 = vmatpush1.bf16.msra.mxu0 %v1172
    %1378 = vmatprep.subr.bf16.mxu0 %v1175
    %1379 = vmatpush1.bf16.msra.mxu0 %v1174
    %1380 = vmatprep.subr.bf16.mxu0 %v1177
    %1381 = vmatpush1.bf16.msra.mxu0 %v1176
    %1382 = vmatprep.subr.bf16.mxu0 %v1179
    %1383 = vmatpush1.bf16.msra.mxu0 %v1178
    %1384 = vmatprep.subr.bf16.mxu0 %v1181
    %1385 = vmatpush1.bf16.msra.mxu0 %v1180
    %1386 = vmatprep.subr.bf16.mxu0 %v1183
    %1387 = vmatpush1.bf16.msra.mxu0 %v1182
    %1388 = vmatprep.subr.bf16.mxu0 %v1185
    %1389 = vmatpush1.bf16.msra.mxu0 %v1184
    %1390 = vmatprep.subr.bf16.mxu0 %v1187
    %1391 = vmatpush1.bf16.msra.mxu0 %v1186
    %1392 = vmatprep.subr.bf16.mxu0 %v1189
    %1393 = vmatpush1.bf16.msra.mxu0 %v1188
    %1394 = vmatprep.subr.bf16.mxu0 %v1191
    %1395 = vmatpush1.bf16.msra.mxu0 %v1190
    %1396 = vmatprep.subr.bf16.mxu0 %v1193
    %1397 = vmatpush1.bf16.msra.mxu0 %v1192
    %1398 = vmatprep.subr.bf16.mxu0 %v1195
    %1399 = vmatpush1.bf16.msra.mxu0 %v1194
    %1400 = vmatprep.subr.bf16.mxu0 %v1197
    %1401 = vmatpush1.bf16.msra.mxu0 %v1196
    %1402 = vmatprep.subr.bf16.mxu0 %v1199
    %1403 = vmatpush1.bf16.msra.mxu0 %v1198
    %1404 = vmatprep.subr.bf16.mxu0 %v1201
    %1405 = vmatpush1.bf16.msra.mxu0 %v1200
    %1406 = vmatprep.mubr.bf16.mxu0 %v1041
    %1407 = vmatmul.mubr.bf16.gmra.mrb[0].mxu0 %v1040
    %v1408 = vpop.f32.mrb[0].mxu0
    %v1409 = vadd.f32 %v1366, %v1408
    %v1410 = vpop.f32.mrb[0].mxu0
    %v1411 = vadd.f32 %v1368, %v1410
    %v1412 = vpop.f32.mrb[0].mxu0
    %v1413 = vadd.f32 %v1370, %v1412
    %v1414 = vpop.f32.mrb[0].mxu0
    %v1415 = vadd.f32 %v1372, %v1414
    %1416 = vdwg.mxu0
    %v1417 = vld [vmem:[%s4] ss:$2 sm:$0x3]
    %s1418 = scalar_lea.vmem %s4, 1
    %v1419 = vld [vmem:[%s1418] ss:$2 sm:$0x3]
    %v1420 = vadd.f32 %v1409, %v1413
    %v1421 = vrot.slane %v1420, 4
    %v1422 = vadd.f32 %v1420, %v1421
    %v1423 = vrot.slane %v1422, 2
    %v1424 = vadd.f32 %v1422, %v1423
    %v1425 = vrot.slane %v1424, 1
    %v1426 = vadd.f32 %v1424, %v1425
    %v1427 = vadd.f32 %v1411, %v1415
    %v1428 = vrot.slane %v1427, 4
    %v1429 = vadd.f32 %v1427, %v1428
    %v1430 = vrot.slane %v1429, 2
    %v1431 = vadd.f32 %v1429, %v1430
    %v1432 = vrot.slane %v1431, 1
    %v1433 = vadd.f32 %v1431, %v1432
    %v1434 = vmul.f32 %v1409, %v1409
    %v1435 = vmul.f32 %v1411, %v1411
    %v1436 = vmul.f32 %v1413, %v1413
    %v1437 = vmul.f32 %v1415, %v1415
    %v1438 = vadd.f32 %v1434, %v1436
    %v1439 = vrot.slane %v1438, 4
    %v1440 = vadd.f32 %v1438, %v1439
    %v1441 = vrot.slane %v1440, 2
    %v1442 = vadd.f32 %v1440, %v1441
    %v1443 = vrot.slane %v1442, 1
    %v1444 = vadd.f32 %v1442, %v1443
    %v1445 = vadd.f32 %v1435, %v1437
    %v1446 = vrot.slane %v1445, 4
    %v1447 = vadd.f32 %v1445, %v1446
    %v1448 = vrot.slane %v1447, 2
    %v1449 = vadd.f32 %v1447, %v1448
    %v1450 = vrot.slane %v1449, 1
    %v1451 = vadd.f32 %v1449, %v1450
    %v1452 = vmul.f32 %v1426, 0.125
    %v1453 = vmul.f32 %v1433, 0.125
    %v1454 = vmul.f32 %v1444, 0.125
    %v1455 = vmul.f32 %v1451, 0.125
    %v1456 = vmul.f32 %v1452, %v1452
    %v1457 = vmul.f32 %v1453, %v1453
    %v1458 = vsub.f32 %v1454, %v1456
    %v1459 = vsub.f32 %v1455, %v1457
    %v1460 = vmax.f32 %v1458, 0.0
    %v1461 = vmax.f32 %v1459, 0.0
    %v1462 = vadd.f32 %v1460, 1e-05
    %v1463 = vadd.f32 %v1461, 1e-05
    %v1464 = vrsqrt.pop %v1462
    %v1465 = vrsqrt.pop %v1463
    %v1468 = vcombine.low %v1464, %v1465
    %v1470 = vunpack.c.l.s4 1966171168
    %v1471 = vunpack.c.0.s8 %v1470
    %v1472 = vlaneseq
    %v1473 = vshrl.u32 %v1472, 7
    %v1474 = vsub.s32 %v1471, %v1473
    %v1475 = vrot.slane %v1468, %v1474
    %v1477 = vunpack.c.l.s4 1966171168
    %v1478 = vunpack.c.0.s8 %v1477
    %v1479 = vlaneseq
    %v1480 = vshrl.u32 %v1479, 7
    %v1481 = vsub.s32 %v1478, %v1480
    %v1482 = vrot.slane %v1475, %v1481
    %v1484 = vmul.f32 %v1417, %v1482
    %v1486 = vlaneseq
    %v1487 = vshrl.u32 %v1486, 7
    %v1488 = vsub.s32 0, %v1487
    %v1489 = vrot.slane %v1484, %v1488
    %v1490 = vlaneseq
    %v1491 = vshrl.u32 %v1490, 7
    %v1492 = vsub.s32 1, %v1491
    %v1493 = vrot.slane %v1484, %v1492
    %v1496 = vmul.f32 %v1452, %v1489
    %v1497 = vmul.f32 %v1453, %v1493
    %v1500 = vcombine.low %v1496, %v1497
    %v1502 = vunpack.c.l.s4 1966171168
    %v1503 = vunpack.c.0.s8 %v1502
    %v1504 = vlaneseq
    %v1505 = vshrl.u32 %v1504, 7
    %v1506 = vsub.s32 %v1503, %v1505
    %v1507 = vrot.slane %v1500, %v1506
    %v1509 = vunpack.c.l.s4 1966171168
    %v1510 = vunpack.c.0.s8 %v1509
    %v1511 = vlaneseq
    %v1512 = vshrl.u32 %v1511, 7
    %v1513 = vsub.s32 %v1510, %v1512
    %v1514 = vrot.slane %v1507, %v1513
    %v1516 = vsub.f32 %v1419, %v1514
    %v1517 = vmul.f32 %v1409, %v1489
    %v1518 = vmul.f32 %v1411, %v1493
    %v1519 = vmul.f32 %v1413, %v1489
    %v1520 = vmul.f32 %v1415, %v1493
    %v1522 = vlaneseq
    %v1523 = vshrl.u32 %v1522, 7
    %v1524 = vsub.s32 0, %v1523
    %v1525 = vrot.slane %v1516, %v1524
    %v1526 = vlaneseq
    %v1527 = vshrl.u32 %v1526, 7
    %v1528 = vsub.s32 1, %v1527
    %v1529 = vrot.slane %v1516, %v1528
    %v1532 = vadd.f32 %v1517, %v1525
    %v1533 = vadd.f32 %v1518, %v1529
    %v1534 = vadd.f32 %v1519, %v1525
    %v1535 = vadd.f32 %v1520, %v1529
    %v1536 = vmax.f32 %v1532, 0.0
    %v1537 = vmax.f32 %v1533, 0.0
    %v1538 = vmax.f32 %v1534, 0.0
    %v1539 = vmax.f32 %v1535, 0.0
    %1540 = vst [vmem:[%s7] sm:$0xff] %v1536
    %1541 = vst [vmem:[%s7 + $0x8] sm:$0xff] %v1537
    %1542 = vst [vmem:[%s7 + $0x10] sm:$0xff] %v1538
    %1543 = vst [vmem:[%s7 + $0x18] sm:$0xff] %v1539
    %v1544 = vpack.c.bf16 %v1538, %v1536
    %v1545 = vpack.c.bf16 %v1539, %v1537
    %v1546 = vld [vmem:[#allocation6] sm:$0xf]
    %v1547 = vld [vmem:[#allocation6 + $0x4] sm:$0xf]
    %v1548 = vld [vmem:[#allocation6 + $0x8] sm:$0xf]
    %v1549 = vld [vmem:[#allocation6 + $0xc] sm:$0xf]
    %v1550 = vld [vmem:[#allocation6 + $0x10] sm:$0xf]
    %v1551 = vld [vmem:[#allocation6 + $0x14] sm:$0xf]
    %v1552 = vld [vmem:[#allocation6 + $0x18] sm:$0xf]
    %v1553 = vld [vmem:[#allocation6 + $0x1c] sm:$0xf]
    %v1554 = vld [vmem:[#allocation6 + $0x20] sm:$0xf]
    %v1555 = vld [vmem:[#allocation6 + $0x24] sm:$0xf]
    %v1556 = vld [vmem:[#allocation6 + $0x28] sm:$0xf]
    %v1557 = vld [vmem:[#allocation6 + $0x2c] sm:$0xf]
    %v1558 = vld [vmem:[#allocation6 + $0x30] sm:$0xf]
    %v1559 = vld [vmem:[#allocation6 + $0x34] sm:$0xf]
    %v1560 = vld [vmem:[#allocation6 + $0x38] sm:$0xf]
    %v1561 = vld [vmem:[#allocation6 + $0x3c] sm:$0xf]
    %v1562 = vld [vmem:[#allocation6 + $0x40] sm:$0xf]
    %v1563 = vld [vmem:[#allocation6 + $0x44] sm:$0xf]
    %v1564 = vld [vmem:[#allocation6 + $0x48] sm:$0xf]
    %v1565 = vld [vmem:[#allocation6 + $0x4c] sm:$0xf]
    %v1566 = vld [vmem:[#allocation6 + $0x50] sm:$0xf]
    %v1567 = vld [vmem:[#allocation6 + $0x54] sm:$0xf]
    %v1568 = vld [vmem:[#allocation6 + $0x58] sm:$0xf]
    %v1569 = vld [vmem:[#allocation6 + $0x5c] sm:$0xf]
    %v1570 = vld [vmem:[#allocation6 + $0x60] sm:$0xf]
    %v1571 = vld [vmem:[#allocation6 + $0x64] sm:$0xf]
    %v1572 = vld [vmem:[#allocation6 + $0x68] sm:$0xf]
    %v1573 = vld [vmem:[#allocation6 + $0x6c] sm:$0xf]
    %v1574 = vld [vmem:[#allocation6 + $0x70] sm:$0xf]
    %v1575 = vld [vmem:[#allocation6 + $0x74] sm:$0xf]
    %v1576 = vld [vmem:[#allocation6 + $0x78] sm:$0xf]
    %v1577 = vld [vmem:[#allocation6 + $0x7c] sm:$0xf]
    %v1578 = vld [vmem:[%s6] sm:$0x1]
    %v1580 = vlaneseq
    %v1581 = vshrl.u32 %v1580, 7
    %v1582 = vsub.s32 0, %v1581
    %v1583 = vrot.slane %v1578, %v1582
    %v1617 = vunpack.c.l.b16 %v1546
    %v1618 = vunpack.c.l.b16 %v1547
    %v1619 = vunpack.c.l.b16 %v1548
    %v1620 = vunpack.c.l.b16 %v1549
    %v1621 = vunpack.c.l.b16 %v1550
    %v1622 = vunpack.c.l.b16 %v1551
    %v1623 = vunpack.c.l.b16 %v1552
    %v1624 = vunpack.c.l.b16 %v1553
    %v1625 = vunpack.c.l.b16 %v1554
    %v1626 = vunpack.c.l.b16 %v1555
    %v1627 = vunpack.c.l.b16 %v1556
    %v1628 = vunpack.c.l.b16 %v1557
    %v1629 = vunpack.c.l.b16 %v1558
    %v1630 = vunpack.c.l.b16 %v1559
    %v1631 = vunpack.c.l.b16 %v1560
    %v1632 = vunpack.c.l.b16 %v1561
    %v1633 = vunpack.c.l.b16 %v1562
    %v1634 = vunpack.c.l.b16 %v1563
    %v1635 = vunpack.c.l.b16 %v1564
    %v1636 = vunpack.c.l.b16 %v1565
    %v1637 = vunpack.c.l.b16 %v1566
    %v1638 = vunpack.c.l.b16 %v1567
    %v1639 = vunpack.c.l.b16 %v1568
    %v1640 = vunpack.c.l.b16 %v1569
    %v1641 = vunpack.c.l.b16 %v1570
    %v1642 = vunpack.c.l.b16 %v1571
    %v1643 = vunpack.c.l.b16 %v1572
    %v1644 = vunpack.c.l.b16 %v1573
    %v1645 = vunpack.c.l.b16 %v1574
    %v1646 = vunpack.c.l.b16 %v1575
    %v1647 = vunpack.c.l.b16 %v1576
    %v1648 = vunpack.c.l.b16 %v1577
    %v1649 = vpack.c.b16 %v1618, %v1617
    %v1650 = vpack.c.b16 %v1620, %v1619
    %v1651 = vpack.c.b16 %v1622, %v1621
    %v1652 = vpack.c.b16 %v1624, %v1623
    %v1653 = vpack.c.b16 %v1626, %v1625
    %v1654 = vpack.c.b16 %v1628, %v1627
    %v1655 = vpack.c.b16 %v1630, %v1629
    %v1656 = vpack.c.b16 %v1632, %v1631
    %v1657 = vpack.c.b16 %v1634, %v1633
    %v1658 = vpack.c.b16 %v1636, %v1635
    %v1659 = vpack.c.b16 %v1638, %v1637
    %v1660 = vpack.c.b16 %v1640, %v1639
    %v1661 = vpack.c.b16 %v1642, %v1641
    %v1662 = vpack.c.b16 %v1644, %v1643
    %v1663 = vpack.c.b16 %v1646, %v1645
    %v1664 = vpack.c.b16 %v1648, %v1647
    %1681 = vmatprep.subr.bf16.mxu0 0
    %1682 = vmatpush1.bf16.msra.mxu0 %v1649
    %1683 = vmatprep.subr.bf16.mxu0 0
    %1684 = vmatpush1.bf16.msra.mxu0 %v1650
    %1685 = vmatprep.subr.bf16.mxu0 0
    %1686 = vmatpush1.bf16.msra.mxu0 %v1651
    %1687 = vmatprep.subr.bf16.mxu0 0
    %1688 = vmatpush1.bf16.msra.mxu0 %v1652
    %1689 = vmatprep.subr.bf16.mxu0 0
    %1690 = vmatpush1.bf16.msra.mxu0 %v1653
    %1691 = vmatprep.subr.bf16.mxu0 0
    %1692 = vmatpush1.bf16.msra.mxu0 %v1654
    %1693 = vmatprep.subr.bf16.mxu0 0
    %1694 = vmatpush1.bf16.msra.mxu0 %v1655
    %1695 = vmatprep.subr.bf16.mxu0 0
    %1696 = vmatpush1.bf16.msra.mxu0 %v1656
    %1697 = vmatprep.subr.bf16.mxu0 0
    %1698 = vmatpush1.bf16.msra.mxu0 %v1657
    %1699 = vmatprep.subr.bf16.mxu0 0
    %1700 = vmatpush1.bf16.msra.mxu0 %v1658
    %1701 = vmatprep.subr.bf16.mxu0 0
    %1702 = vmatpush1.bf16.msra.mxu0 %v1659
    %1703 = vmatprep.subr.bf16.mxu0 0
    %1704 = vmatpush1.bf16.msra.mxu0 %v1660
    %1705 = vmatprep.subr.bf16.mxu0 0
    %1706 = vmatpush1.bf16.msra.mxu0 %v1661
    %1707 = vmatprep.subr.bf16.mxu0 0
    %1708 = vmatpush1.bf16.msra.mxu0 %v1662
    %1709 = vmatprep.subr.bf16.mxu0 0
    %1710 = vmatpush1.bf16.msra.mxu0 %v1663
    %1711 = vmatprep.subr.bf16.mxu0 0
    %1712 = vmatpush1.bf16.msra.mxu0 %v1664
    %1713 = vmatprep.mubr.bf16.mxu0 %v1545
    %1714 = vmatmul.mubr.bf16.gmra.mrb[0].mxu0 %v1544
    %v1715 = vpop.f32.mrb[0].mxu0
    %v1716 = vadd.f32 %v1583, %v1715
    %v1717 = vpop.f32.mrb[0].mxu0
    %v1718 = vpop.f32.mrb[0].mxu0
    %v1719 = vadd.f32 %v1583, %v1718
    %v1720 = vpop.f32.mrb[0].mxu0
    %1721 = vdwg.mxu0
    %1722 = vst [vmem:[%s8] sm:$0xff] %v1716
    %1723 = vst [vmem:[%s8 + $0x8] sm:$0xff] %v1719
    // Predicated region
    $region34: #{plain_mlp_forward.1} parent=1 // pred_check
      _
    $region35: #{plain_mlp_forward.1} parent=1 // pred_check_branch
      %1725 = sbr.rel (0) target = $region37
    $region36: #{plain_mlp_forward.1} parent=1 // pred_region
      _
    $region37: #{plain_mlp_forward.1} parent=1 // pred_fallthru
      _
    // Predicated region
    $region38: #{plain_mlp_forward.1} parent=1 // pred_check
      _
    $region39: #{plain_mlp_forward.1} parent=1 // pred_check_branch
      %1727 = sbr.rel (0) target = $region41
    $region40: #{plain_mlp_forward.1} parent=1 // pred_region
      _
    $region41: #{plain_mlp_forward.1} parent=1 // pred_fallthru
      _
    // Predicated region
    $region42: #{plain_mlp_forward.1} parent=1 // pred_check
      _
    $region43: #{plain_mlp_forward.1} parent=1 // pred_check_branch
      %1729 = sbr.rel (0) target = $region45
    $region44: #{plain_mlp_forward.1} parent=1 // pred_region
      _
    $region45: #{plain_mlp_forward.1} parent=1 // pred_fallthru
      _
    // Predicated region
    $region46: #{plain_mlp_forward.1} parent=1 // pred_check
      _
    $region47: #{plain_mlp_forward.1} parent=1 // pred_check_branch
      %1731 = sbr.rel (0) target = $region49
    $region48: #{plain_mlp_forward.1} parent=1 // pred_region
      _
    $region49: #{plain_mlp_forward.1} parent=1 // pred_fallthru
      _
    %1732 = vsyncpa [#allocation5], 1
    %1733 = vsyncpa [#allocation7], 1
  %1734 = vsyncmov [#allocation3]
  %s1735 = vpop.sfrf %1734
  %p1736 = scmp.eq.s32.totalorder %s1735, 0
  %p1737 = pneg %p1736
  %1739 = shalt.err (%p1737)

</llo_original>
